<compile_context>
chip_gen: v7x
topology: tpu7x:2x2x1
jax: 0.10.0
libtpu: 0.0.40
codegen_flags: <defaults>
</compile_context>

<pallas_src>
import jax
import jax.numpy as jnp
from jax import lax
from jax.experimental import pallas as pl
from jax.experimental.pallas import tpu as pltpu  # noqa: F401  (TPU backend)

# ----------------------- problem sizes (small, synthetic) --------------------
B, C, H, W = 2, 4, 16, 16        # batch, in-channels, spatial
OC = 8                           # ext output channels
NUM_CLASSES = 4                  # head output classes
KH = KW = 3                      # conv kernel
PAD = 1
P = H * W                        # spatial positions per image (stride 1, pad 1)
BP = B * P                       # 512 -> lane-dense (multiple of 128)
K_COL = KH * KW * C              # 36   flattened conv contraction size

SHIFT_PAD = PAD * W + PAD        # 17 = max |lane shift| of any 3x3 tap
XW = BP + 2 * SHIFT_PAD          # 546  padded lane width of the activation slab

ROW_PAD = 8                      # sublane rows of the param / logits slabs
LANE_PAD = 128                   # lane cols of the param / logits slabs
BCONV_COL = K_COL                # param-slab column 36: conv bias
FC_W_COL = 40                    # param-slab columns 40..47: fc weight
FC_B_COL = FC_W_COL + OC         # param-slab column 48: fc bias

# power-of-two spatial dims -> in-kernel index math uses shifts/ands only
assert (W & (W - 1)) == 0 and (H & (H - 1)) == 0 and (P & (P - 1)) == 0
W_BITS = W.bit_length() - 1      # 4
P_BITS = P.bit_length() - 1      # 8


# ------------------------------- Pallas kernel --------------------------------
def extractor_head_kernel(x_ref, p_ref, o_ref):
    # x_ref : (C, XW)             activations, lane order (b, i, j), zero-padded
    # p_ref : (ROW_PAD, LANE_PAD) packed params (conv W/b, fc W/b), zero-padded
    # o_ref : (ROW_PAD, LANE_PAD) logits^T, zero-padded slab (unmasked store)
    x = x_ref[...]
    params = p_ref[...]

    # image-coordinate decode of the flattened (b, i, j) lane axis (VPU only)
    f = lax.broadcasted_iota(jnp.int32, (C, BP), 1)
    i = (f >> W_BITS) & (H - 1)          # row within image
    j = f & (W - 1)                      # col within image

    # ---- ext.conv: 9 taps = static lane slices + iota mask + small MXU matmuls
    acc = jnp.zeros((OC, BP), jnp.float32)
    for kh in range(KH):
        for kw in range(KW):
            dh, dw = kh - PAD, kw - PAD
            start = SHIFT_PAD + dh * W + dw            # static slice offset
            win = x[:, start:start + BP]               # (C, BP)
            valid = ((i + dh >= 0) & (i + dh < H) &
                     (j + dw >= 0) & (j + dw < W))
            win = jnp.where(valid, win, 0.0)
            off = kh * KW + kw
            w_tap = params[:, off * C:(off + 1) * C]   # (OC, C)
            acc = acc + jnp.dot(w_tap, win, preferred_element_type=jnp.float32)

    # ---- ext: bias + ReLU (VPU), then global average pool folded into the MXU
    acc = jnp.maximum(acc + params[:, BCONV_COL:BCONV_COL + 1], 0.0)  # (OC, BP)

    rows = lax.broadcasted_iota(jnp.int32, (BP, LANE_PAD), 0)
    cols = lax.broadcasted_iota(jnp.int32, (BP, LANE_PAD), 1)
    pool = jnp.where((rows >> P_BITS) == cols,
                     jnp.float32(1.0 / P), jnp.float32(0.0))          # (BP, 128)
    feats = jnp.dot(acc, pool, preferred_element_type=jnp.float32)    # (OC, 128)

    # ---- head: linear (weight pre-oriented & zero-padded, no in-kernel transpose)
    w_fc = params[:, FC_W_COL:FC_W_COL + OC]            # (ROW_PAD, OC)
    b_fc = params[:, FC_B_COL:FC_B_COL + 1]             # (ROW_PAD, 1)
    o_ref[...] = jnp.dot(w_fc, feats, preferred_element_type=jnp.float32) + b_fc


# --------------------------------- wrapper ------------------------------------
@jax.jit
def extractor_head(x, w_conv, b_conv, w_fc, b_fc):
    """head(ext(x)) — x: (B, C, H, W) f32 -> logits (B, NUM_CLASSES) f32."""
    # activations: lane-dense (C, B*H*W), zero-padded lanes for the 3x3 taps
    x_lanes = jnp.transpose(x, (1, 0, 2, 3)).reshape(C, BP)
    x_lanes = jnp.pad(x_lanes, ((0, 0), (SHIFT_PAD, SHIFT_PAD)))      # (C, XW)

    # all parameters packed into one zero-padded (8, 128) slab (single DMA)
    w_col = jnp.transpose(w_conv, (0, 2, 3, 1)).reshape(OC, K_COL)    # cols=(kh,kw,c)
    slab = jnp.zeros((ROW_PAD, LANE_PAD), jnp.float32)
    slab = slab.at[:OC, :K_COL].set(w_col)
    slab = slab.at[:OC, BCONV_COL].set(b_conv)
    slab = slab.at[:NUM_CLASSES, FC_W_COL:FC_W_COL + OC].set(w_fc)
    slab = slab.at[:NUM_CLASSES, FC_B_COL].set(b_fc)

    # ---- fused ext + head: one gridless Pallas kernel, two tiny inputs ----
    logits_pad = pl.pallas_call(
        extractor_head_kernel,
        in_specs=[
            pl.BlockSpec((C, XW), lambda: (0, 0)),
            pl.BlockSpec((ROW_PAD, LANE_PAD), lambda: (0, 0)),
        ],
        out_specs=pl.BlockSpec((ROW_PAD, LANE_PAD), lambda: (0, 0)),
        out_shape=jax.ShapeDtypeStruct((ROW_PAD, LANE_PAD), jnp.float32),
    )(x_lanes, slab)

    # strip zero padding; return PyTorch-shaped logits (B, NUM_CLASSES)
    return jnp.transpose(logits_pad[:NUM_CLASSES, :B])


# ------------------------------ pure-JAX reference -----------------------------
def _reference(x, w_conv, b_conv, w_fc, b_fc):
    y = lax.conv_general_dilated(
        x, w_conv, window_strides=(1, 1), padding=((PAD, PAD), (PAD, PAD)),
        dimension_numbers=("NCHW", "OIHW", "NCHW"),
        precision=lax.Precision.HIGHEST)
    y = jnp.maximum(y + b_conv[None, :, None, None], 0.0)
    feats = jnp.mean(y, axis=(2, 3))
    return jnp.dot(feats, w_fc.T, precision=lax.Precision.HIGHEST) + b_fc


# ----------------------------------- main --------------------------------------
if __name__ == "__main__":
    key = jax.random.PRNGKey(0)
    k1, k2, k3, k4, k5 = jax.random.split(key, 5)

    # deterministic synthetic parameters (PyTorch shapes for the instantiated pair)
    w_conv = 0.1 * jax.random.normal(k1, (OC, C, KH, KW), jnp.float32)
    b_conv = 0.1 * jax.random.normal(k2, (OC,), jnp.float32)
    w_fc = 0.1 * jax.random.normal(k3, (NUM_CLASSES, OC), jnp.float32)
    b_fc = 0.1 * jax.random.normal(k4, (NUM_CLASSES,), jnp.float32)

    # input (NCHW, like PyTorch)
    x = jax.random.normal(k5, (B, C, H, W), jnp.float32)

    out = extractor_head(x, w_conv, b_conv, w_fc, b_fc)
    jax.block_until_ready(out)
    assert out.shape == (B, NUM_CLASSES) and out.dtype == jnp.float32

    ref = _reference(x, w_conv, b_conv, w_fc, b_fc)
    assert jnp.allclose(out, ref, rtol=1e-4, atol=1e-4), (
        f"max abs err {jnp.max(jnp.abs(out - ref))}")
    print("KERNEL_OK")
</pallas_src>

<mosaic_0001>
module attributes {stable_mosaic.version = 11 : i64} {
  func.func @extractor_head_kernel(%arg0: memref<4x546xf32, #tpu.memory_space<vmem>>, %arg1: memref<8x128xf32, #tpu.memory_space<vmem>>, %arg2: memref<8x128xf32, #tpu.memory_space<vmem>>) attributes {dimension_semantics = [], scalar_prefetch = 0 : i64, scratch_operands = 0 : i64, tpu.core_type = #tpu.core_type<tc>} {
    %c0 = arith.constant 0 : index
    %c0_0 = arith.constant 0 : index
    %0 = vector.load %arg0[%c0, %c0_0] : memref<4x546xf32, #tpu.memory_space<vmem>>, vector<4x546xf32>
    %c0_1 = arith.constant 0 : index
    %c0_2 = arith.constant 0 : index
    %1 = vector.load %arg1[%c0_1, %c0_2] : memref<8x128xf32, #tpu.memory_space<vmem>>, vector<8x128xf32>
    %2 = tpu.iota {dimensions = array<i32: 1>} : vector<4x512xi32>
    %c4_i32 = arith.constant 4 : i32
    %3 = vector.broadcast %c4_i32 : i32 to vector<4x512xi32>
    %4 = arith.shrsi %2, %3 : vector<4x512xi32>
    %c15_i32 = arith.constant 15 : i32
    %5 = vector.broadcast %c15_i32 : i32 to vector<4x512xi32>
    %6 = arith.andi %4, %5 : vector<4x512xi32>
    %c15_i32_3 = arith.constant 15 : i32
    %7 = vector.broadcast %c15_i32_3 : i32 to vector<4x512xi32>
    %8 = arith.andi %2, %7 : vector<4x512xi32>
    %cst = arith.constant 0.000000e+00 : f32
    %9 = vector.broadcast %cst : f32 to vector<8x512xf32>
    %10 = vector.extract_strided_slice %0 {offsets = [0, 0], sizes = [4, 512], strides = [1, 1]} : vector<4x546xf32> to vector<4x512xf32>
    %c-1_i32 = arith.constant -1 : i32
    %11 = vector.broadcast %c-1_i32 : i32 to vector<4x512xi32>
    %12 = arith.addi %6, %11 : vector<4x512xi32>
    %c0_i32 = arith.constant 0 : i32
    %13 = vector.broadcast %c0_i32 : i32 to vector<4x512xi32>
    %14 = arith.cmpi sge, %12, %13 : vector<4x512xi32>
    %c-1_i32_4 = arith.constant -1 : i32
    %15 = vector.broadcast %c-1_i32_4 : i32 to vector<4x512xi32>
    %16 = arith.addi %6, %15 : vector<4x512xi32>
    %c16_i32 = arith.constant 16 : i32
    %17 = vector.broadcast %c16_i32 : i32 to vector<4x512xi32>
    %18 = arith.cmpi slt, %16, %17 : vector<4x512xi32>
    %19 = arith.andi %14, %18 : vector<4x512xi1>
    %c-1_i32_5 = arith.constant -1 : i32
    %20 = vector.broadcast %c-1_i32_5 : i32 to vector<4x512xi32>
    %21 = arith.addi %8, %20 : vector<4x512xi32>
    %c0_i32_6 = arith.constant 0 : i32
    %22 = vector.broadcast %c0_i32_6 : i32 to vector<4x512xi32>
    %23 = arith.cmpi sge, %21, %22 : vector<4x512xi32>
    %24 = arith.andi %19, %23 : vector<4x512xi1>
    %c-1_i32_7 = arith.constant -1 : i32
    %25 = vector.broadcast %c-1_i32_7 : i32 to vector<4x512xi32>
    %26 = arith.addi %8, %25 : vector<4x512xi32>
    %c16_i32_8 = arith.constant 16 : i32
    %27 = vector.broadcast %c16_i32_8 : i32 to vector<4x512xi32>
    %28 = arith.cmpi slt, %26, %27 : vector<4x512xi32>
    %29 = arith.andi %24, %28 : vector<4x512xi1>
    %cst_9 = arith.constant 0.000000e+00 : f32
    %30 = vector.broadcast %cst_9 : f32 to vector<4x512xf32>
    %31 = arith.select %29, %10, %30 : vector<4x512xi1>, vector<4x512xf32>
    %32 = vector.extract_strided_slice %1 {offsets = [0, 0], sizes = [8, 4], strides = [1, 1]} : vector<8x128xf32> to vector<8x4xf32>
    %cst_10 = arith.constant dense<0.000000e+00> : vector<8x512xf32>
    %33 = tpu.matmul %32, %31, %cst_10 {dimension_numbers = #tpu.dot_dimension_numbers<[1], [0], [0], [1], [0, 0, 1, 1], [], []>} : vector<8x4xf32>, vector<4x512xf32>, vector<8x512xf32> -> vector<8x512xf32>
    %34 = arith.addf %9, %33 : vector<8x512xf32>
    %35 = vector.extract_strided_slice %0 {offsets = [0, 1], sizes = [4, 512], strides = [1, 1]} : vector<4x546xf32> to vector<4x512xf32>
    %c-1_i32_11 = arith.constant -1 : i32
    %36 = vector.broadcast %c-1_i32_11 : i32 to vector<4x512xi32>
    %37 = arith.addi %6, %36 : vector<4x512xi32>
    %c0_i32_12 = arith.constant 0 : i32
    %38 = vector.broadcast %c0_i32_12 : i32 to vector<4x512xi32>
    %39 = arith.cmpi sge, %37, %38 : vector<4x512xi32>
    %c-1_i32_13 = arith.constant -1 : i32
    %40 = vector.broadcast %c-1_i32_13 : i32 to vector<4x512xi32>
    %41 = arith.addi %6, %40 : vector<4x512xi32>
    %c16_i32_14 = arith.constant 16 : i32
    %42 = vector.broadcast %c16_i32_14 : i32 to vector<4x512xi32>
    %43 = arith.cmpi slt, %41, %42 : vector<4x512xi32>
    %44 = arith.andi %39, %43 : vector<4x512xi1>
    %c0_i32_15 = arith.constant 0 : i32
    %45 = vector.broadcast %c0_i32_15 : i32 to vector<4x512xi32>
    %46 = arith.addi %8, %45 : vector<4x512xi32>
    %c0_i32_16 = arith.constant 0 : i32
    %47 = vector.broadcast %c0_i32_16 : i32 to vector<4x512xi32>
    %48 = arith.cmpi sge, %46, %47 : vector<4x512xi32>
    %49 = arith.andi %44, %48 : vector<4x512xi1>
    %c0_i32_17 = arith.constant 0 : i32
    %50 = vector.broadcast %c0_i32_17 : i32 to vector<4x512xi32>
    %51 = arith.addi %8, %50 : vector<4x512xi32>
    %c16_i32_18 = arith.constant 16 : i32
    %52 = vector.broadcast %c16_i32_18 : i32 to vector<4x512xi32>
    %53 = arith.cmpi slt, %51, %52 : vector<4x512xi32>
    %54 = arith.andi %49, %53 : vector<4x512xi1>
    %cst_19 = arith.constant 0.000000e+00 : f32
    %55 = vector.broadcast %cst_19 : f32 to vector<4x512xf32>
    %56 = arith.select %54, %35, %55 : vector<4x512xi1>, vector<4x512xf32>
    %57 = vector.extract_strided_slice %1 {offsets = [0, 4], sizes = [8, 4], strides = [1, 1]} : vector<8x128xf32> to vector<8x4xf32>
    %cst_20 = arith.constant dense<0.000000e+00> : vector<8x512xf32>
    %58 = tpu.matmul %57, %56, %cst_20 {dimension_numbers = #tpu.dot_dimension_numbers<[1], [0], [0], [1], [0, 0, 1, 1], [], []>} : vector<8x4xf32>, vector<4x512xf32>, vector<8x512xf32> -> vector<8x512xf32>
    %59 = arith.addf %34, %58 : vector<8x512xf32>
    %60 = vector.extract_strided_slice %0 {offsets = [0, 2], sizes = [4, 512], strides = [1, 1]} : vector<4x546xf32> to vector<4x512xf32>
    %c-1_i32_21 = arith.constant -1 : i32
    %61 = vector.broadcast %c-1_i32_21 : i32 to vector<4x512xi32>
    %62 = arith.addi %6, %61 : vector<4x512xi32>
    %c0_i32_22 = arith.constant 0 : i32
    %63 = vector.broadcast %c0_i32_22 : i32 to vector<4x512xi32>
    %64 = arith.cmpi sge, %62, %63 : vector<4x512xi32>
    %c-1_i32_23 = arith.constant -1 : i32
    %65 = vector.broadcast %c-1_i32_23 : i32 to vector<4x512xi32>
    %66 = arith.addi %6, %65 : vector<4x512xi32>
    %c16_i32_24 = arith.constant 16 : i32
    %67 = vector.broadcast %c16_i32_24 : i32 to vector<4x512xi32>
    %68 = arith.cmpi slt, %66, %67 : vector<4x512xi32>
    %69 = arith.andi %64, %68 : vector<4x512xi1>
    %c1_i32 = arith.constant 1 : i32
    %70 = vector.broadcast %c1_i32 : i32 to vector<4x512xi32>
    %71 = arith.addi %8, %70 : vector<4x512xi32>
    %c0_i32_25 = arith.constant 0 : i32
    %72 = vector.broadcast %c0_i32_25 : i32 to vector<4x512xi32>
    %73 = arith.cmpi sge, %71, %72 : vector<4x512xi32>
    %74 = arith.andi %69, %73 : vector<4x512xi1>
    %c1_i32_26 = arith.constant 1 : i32
    %75 = vector.broadcast %c1_i32_26 : i32 to vector<4x512xi32>
    %76 = arith.addi %8, %75 : vector<4x512xi32>
    %c16_i32_27 = arith.constant 16 : i32
    %77 = vector.broadcast %c16_i32_27 : i32 to vector<4x512xi32>
    %78 = arith.cmpi slt, %76, %77 : vector<4x512xi32>
    %79 = arith.andi %74, %78 : vector<4x512xi1>
    %cst_28 = arith.constant 0.000000e+00 : f32
    %80 = vector.broadcast %cst_28 : f32 to vector<4x512xf32>
    %81 = arith.select %79, %60, %80 : vector<4x512xi1>, vector<4x512xf32>
    %82 = vector.extract_strided_slice %1 {offsets = [0, 8], sizes = [8, 4], strides = [1, 1]} : vector<8x128xf32> to vector<8x4xf32>
    %cst_29 = arith.constant dense<0.000000e+00> : vector<8x512xf32>
    %83 = tpu.matmul %82, %81, %cst_29 {dimension_numbers = #tpu.dot_dimension_numbers<[1], [0], [0], [1], [0, 0, 1, 1], [], []>} : vector<8x4xf32>, vector<4x512xf32>, vector<8x512xf32> -> vector<8x512xf32>
    %84 = arith.addf %59, %83 : vector<8x512xf32>
    %85 = vector.extract_strided_slice %0 {offsets = [0, 16], sizes = [4, 512], strides = [1, 1]} : vector<4x546xf32> to vector<4x512xf32>
    %c0_i32_30 = arith.constant 0 : i32
    %86 = vector.broadcast %c0_i32_30 : i32 to vector<4x512xi32>
    %87 = arith.addi %6, %86 : vector<4x512xi32>
    %c0_i32_31 = arith.constant 0 : i32
    %88 = vector.broadcast %c0_i32_31 : i32 to vector<4x512xi32>
    %89 = arith.cmpi sge, %87, %88 : vector<4x512xi32>
    %c0_i32_32 = arith.constant 0 : i32
    %90 = vector.broadcast %c0_i32_32 : i32 to vector<4x512xi32>
    %91 = arith.addi %6, %90 : vector<4x512xi32>
    %c16_i32_33 = arith.constant 16 : i32
    %92 = vector.broadcast %c16_i32_33 : i32 to vector<4x512xi32>
    %93 = arith.cmpi slt, %91, %92 : vector<4x512xi32>
    %94 = arith.andi %89, %93 : vector<4x512xi1>
    %c-1_i32_34 = arith.constant -1 : i32
    %95 = vector.broadcast %c-1_i32_34 : i32 to vector<4x512xi32>
    %96 = arith.addi %8, %95 : vector<4x512xi32>
    %c0_i32_35 = arith.constant 0 : i32
    %97 = vector.broadcast %c0_i32_35 : i32 to vector<4x512xi32>
    %98 = arith.cmpi sge, %96, %97 : vector<4x512xi32>
    %99 = arith.andi %94, %98 : vector<4x512xi1>
    %c-1_i32_36 = arith.constant -1 : i32
    %100 = vector.broadcast %c-1_i32_36 : i32 to vector<4x512xi32>
    %101 = arith.addi %8, %100 : vector<4x512xi32>
    %c16_i32_37 = arith.constant 16 : i32
    %102 = vector.broadcast %c16_i32_37 : i32 to vector<4x512xi32>
    %103 = arith.cmpi slt, %101, %102 : vector<4x512xi32>
    %104 = arith.andi %99, %103 : vector<4x512xi1>
    %cst_38 = arith.constant 0.000000e+00 : f32
    %105 = vector.broadcast %cst_38 : f32 to vector<4x512xf32>
    %106 = arith.select %104, %85, %105 : vector<4x512xi1>, vector<4x512xf32>
    %107 = vector.extract_strided_slice %1 {offsets = [0, 12], sizes = [8, 4], strides = [1, 1]} : vector<8x128xf32> to vector<8x4xf32>
    %cst_39 = arith.constant dense<0.000000e+00> : vector<8x512xf32>
    %108 = tpu.matmul %107, %106, %cst_39 {dimension_numbers = #tpu.dot_dimension_numbers<[1], [0], [0], [1], [0, 0, 1, 1], [], []>} : vector<8x4xf32>, vector<4x512xf32>, vector<8x512xf32> -> vector<8x512xf32>
    %109 = arith.addf %84, %108 : vector<8x512xf32>
    %110 = vector.extract_strided_slice %0 {offsets = [0, 17], sizes = [4, 512], strides = [1, 1]} : vector<4x546xf32> to vector<4x512xf32>
    %c0_i32_40 = arith.constant 0 : i32
    %111 = vector.broadcast %c0_i32_40 : i32 to vector<4x512xi32>
    %112 = arith.addi %6, %111 : vector<4x512xi32>
    %c0_i32_41 = arith.constant 0 : i32
    %113 = vector.broadcast %c0_i32_41 : i32 to vector<4x512xi32>
    %114 = arith.cmpi sge, %112, %113 : vector<4x512xi32>
    %c0_i32_42 = arith.constant 0 : i32
    %115 = vector.broadcast %c0_i32_42 : i32 to vector<4x512xi32>
    %116 = arith.addi %6, %115 : vector<4x512xi32>
    %c16_i32_43 = arith.constant 16 : i32
    %117 = vector.broadcast %c16_i32_43 : i32 to vector<4x512xi32>
    %118 = arith.cmpi slt, %116, %117 : vector<4x512xi32>
    %119 = arith.andi %114, %118 : vector<4x512xi1>
    %c0_i32_44 = arith.constant 0 : i32
    %120 = vector.broadcast %c0_i32_44 : i32 to vector<4x512xi32>
    %121 = arith.addi %8, %120 : vector<4x512xi32>
    %c0_i32_45 = arith.constant 0 : i32
    %122 = vector.broadcast %c0_i32_45 : i32 to vector<4x512xi32>
    %123 = arith.cmpi sge, %121, %122 : vector<4x512xi32>
    %124 = arith.andi %119, %123 : vector<4x512xi1>
    %c0_i32_46 = arith.constant 0 : i32
    %125 = vector.broadcast %c0_i32_46 : i32 to vector<4x512xi32>
    %126 = arith.addi %8, %125 : vector<4x512xi32>
    %c16_i32_47 = arith.constant 16 : i32
    %127 = vector.broadcast %c16_i32_47 : i32 to vector<4x512xi32>
    %128 = arith.cmpi slt, %126, %127 : vector<4x512xi32>
    %129 = arith.andi %124, %128 : vector<4x512xi1>
    %cst_48 = arith.constant 0.000000e+00 : f32
    %130 = vector.broadcast %cst_48 : f32 to vector<4x512xf32>
    %131 = arith.select %129, %110, %130 : vector<4x512xi1>, vector<4x512xf32>
    %132 = vector.extract_strided_slice %1 {offsets = [0, 16], sizes = [8, 4], strides = [1, 1]} : vector<8x128xf32> to vector<8x4xf32>
    %cst_49 = arith.constant dense<0.000000e+00> : vector<8x512xf32>
    %133 = tpu.matmul %132, %131, %cst_49 {dimension_numbers = #tpu.dot_dimension_numbers<[1], [0], [0], [1], [0, 0, 1, 1], [], []>} : vector<8x4xf32>, vector<4x512xf32>, vector<8x512xf32> -> vector<8x512xf32>
    %134 = arith.addf %109, %133 : vector<8x512xf32>
    %135 = vector.extract_strided_slice %0 {offsets = [0, 18], sizes = [4, 512], strides = [1, 1]} : vector<4x546xf32> to vector<4x512xf32>
    %c0_i32_50 = arith.constant 0 : i32
    %136 = vector.broadcast %c0_i32_50 : i32 to vector<4x512xi32>
    %137 = arith.addi %6, %136 : vector<4x512xi32>
    %c0_i32_51 = arith.constant 0 : i32
    %138 = vector.broadcast %c0_i32_51 : i32 to vector<4x512xi32>
    %139 = arith.cmpi sge, %137, %138 : vector<4x512xi32>
    %c0_i32_52 = arith.constant 0 : i32
    %140 = vector.broadcast %c0_i32_52 : i32 to vector<4x512xi32>
    %141 = arith.addi %6, %140 : vector<4x512xi32>
    %c16_i32_53 = arith.constant 16 : i32
    %142 = vector.broadcast %c16_i32_53 : i32 to vector<4x512xi32>
    %143 = arith.cmpi slt, %141, %142 : vector<4x512xi32>
    %144 = arith.andi %139, %143 : vector<4x512xi1>
    %c1_i32_54 = arith.constant 1 : i32
    %145 = vector.broadcast %c1_i32_54 : i32 to vector<4x512xi32>
    %146 = arith.addi %8, %145 : vector<4x512xi32>
    %c0_i32_55 = arith.constant 0 : i32
    %147 = vector.broadcast %c0_i32_55 : i32 to vector<4x512xi32>
    %148 = arith.cmpi sge, %146, %147 : vector<4x512xi32>
    %149 = arith.andi %144, %148 : vector<4x512xi1>
    %c1_i32_56 = arith.constant 1 : i32
    %150 = vector.broadcast %c1_i32_56 : i32 to vector<4x512xi32>
    %151 = arith.addi %8, %150 : vector<4x512xi32>
    %c16_i32_57 = arith.constant 16 : i32
    %152 = vector.broadcast %c16_i32_57 : i32 to vector<4x512xi32>
    %153 = arith.cmpi slt, %151, %152 : vector<4x512xi32>
    %154 = arith.andi %149, %153 : vector<4x512xi1>
    %cst_58 = arith.constant 0.000000e+00 : f32
    %155 = vector.broadcast %cst_58 : f32 to vector<4x512xf32>
    %156 = arith.select %154, %135, %155 : vector<4x512xi1>, vector<4x512xf32>
    %157 = vector.extract_strided_slice %1 {offsets = [0, 20], sizes = [8, 4], strides = [1, 1]} : vector<8x128xf32> to vector<8x4xf32>
    %cst_59 = arith.constant dense<0.000000e+00> : vector<8x512xf32>
    %158 = tpu.matmul %157, %156, %cst_59 {dimension_numbers = #tpu.dot_dimension_numbers<[1], [0], [0], [1], [0, 0, 1, 1], [], []>} : vector<8x4xf32>, vector<4x512xf32>, vector<8x512xf32> -> vector<8x512xf32>
    %159 = arith.addf %134, %158 : vector<8x512xf32>
    %160 = vector.extract_strided_slice %0 {offsets = [0, 32], sizes = [4, 512], strides = [1, 1]} : vector<4x546xf32> to vector<4x512xf32>
    %c1_i32_60 = arith.constant 1 : i32
    %161 = vector.broadcast %c1_i32_60 : i32 to vector<4x512xi32>
    %162 = arith.addi %6, %161 : vector<4x512xi32>
    %c0_i32_61 = arith.constant 0 : i32
    %163 = vector.broadcast %c0_i32_61 : i32 to vector<4x512xi32>
    %164 = arith.cmpi sge, %162, %163 : vector<4x512xi32>
    %c1_i32_62 = arith.constant 1 : i32
    %165 = vector.broadcast %c1_i32_62 : i32 to vector<4x512xi32>
    %166 = arith.addi %6, %165 : vector<4x512xi32>
    %c16_i32_63 = arith.constant 16 : i32
    %167 = vector.broadcast %c16_i32_63 : i32 to vector<4x512xi32>
    %168 = arith.cmpi slt, %166, %167 : vector<4x512xi32>
    %169 = arith.andi %164, %168 : vector<4x512xi1>
    %c-1_i32_64 = arith.constant -1 : i32
    %170 = vector.broadcast %c-1_i32_64 : i32 to vector<4x512xi32>
    %171 = arith.addi %8, %170 : vector<4x512xi32>
    %c0_i32_65 = arith.constant 0 : i32
    %172 = vector.broadcast %c0_i32_65 : i32 to vector<4x512xi32>
    %173 = arith.cmpi sge, %171, %172 : vector<4x512xi32>
    %174 = arith.andi %169, %173 : vector<4x512xi1>
    %c-1_i32_66 = arith.constant -1 : i32
    %175 = vector.broadcast %c-1_i32_66 : i32 to vector<4x512xi32>
    %176 = arith.addi %8, %175 : vector<4x512xi32>
    %c16_i32_67 = arith.constant 16 : i32
    %177 = vector.broadcast %c16_i32_67 : i32 to vector<4x512xi32>
    %178 = arith.cmpi slt, %176, %177 : vector<4x512xi32>
    %179 = arith.andi %174, %178 : vector<4x512xi1>
    %cst_68 = arith.constant 0.000000e+00 : f32
    %180 = vector.broadcast %cst_68 : f32 to vector<4x512xf32>
    %181 = arith.select %179, %160, %180 : vector<4x512xi1>, vector<4x512xf32>
    %182 = vector.extract_strided_slice %1 {offsets = [0, 24], sizes = [8, 4], strides = [1, 1]} : vector<8x128xf32> to vector<8x4xf32>
    %cst_69 = arith.constant dense<0.000000e+00> : vector<8x512xf32>
    %183 = tpu.matmul %182, %181, %cst_69 {dimension_numbers = #tpu.dot_dimension_numbers<[1], [0], [0], [1], [0, 0, 1, 1], [], []>} : vector<8x4xf32>, vector<4x512xf32>, vector<8x512xf32> -> vector<8x512xf32>
    %184 = arith.addf %159, %183 : vector<8x512xf32>
    %185 = vector.extract_strided_slice %0 {offsets = [0, 33], sizes = [4, 512], strides = [1, 1]} : vector<4x546xf32> to vector<4x512xf32>
    %c1_i32_70 = arith.constant 1 : i32
    %186 = vector.broadcast %c1_i32_70 : i32 to vector<4x512xi32>
    %187 = arith.addi %6, %186 : vector<4x512xi32>
    %c0_i32_71 = arith.constant 0 : i32
    %188 = vector.broadcast %c0_i32_71 : i32 to vector<4x512xi32>
    %189 = arith.cmpi sge, %187, %188 : vector<4x512xi32>
    %c1_i32_72 = arith.constant 1 : i32
    %190 = vector.broadcast %c1_i32_72 : i32 to vector<4x512xi32>
    %191 = arith.addi %6, %190 : vector<4x512xi32>
    %c16_i32_73 = arith.constant 16 : i32
    %192 = vector.broadcast %c16_i32_73 : i32 to vector<4x512xi32>
    %193 = arith.cmpi slt, %191, %192 : vector<4x512xi32>
    %194 = arith.andi %189, %193 : vector<4x512xi1>
    %c0_i32_74 = arith.constant 0 : i32
    %195 = vector.broadcast %c0_i32_74 : i32 to vector<4x512xi32>
    %196 = arith.addi %8, %195 : vector<4x512xi32>
    %c0_i32_75 = arith.constant 0 : i32
    %197 = vector.broadcast %c0_i32_75 : i32 to vector<4x512xi32>
    %198 = arith.cmpi sge, %196, %197 : vector<4x512xi32>
    %199 = arith.andi %194, %198 : vector<4x512xi1>
    %c0_i32_76 = arith.constant 0 : i32
    %200 = vector.broadcast %c0_i32_76 : i32 to vector<4x512xi32>
    %201 = arith.addi %8, %200 : vector<4x512xi32>
    %c16_i32_77 = arith.constant 16 : i32
    %202 = vector.broadcast %c16_i32_77 : i32 to vector<4x512xi32>
    %203 = arith.cmpi slt, %201, %202 : vector<4x512xi32>
    %204 = arith.andi %199, %203 : vector<4x512xi1>
    %cst_78 = arith.constant 0.000000e+00 : f32
    %205 = vector.broadcast %cst_78 : f32 to vector<4x512xf32>
    %206 = arith.select %204, %185, %205 : vector<4x512xi1>, vector<4x512xf32>
    %207 = vector.extract_strided_slice %1 {offsets = [0, 28], sizes = [8, 4], strides = [1, 1]} : vector<8x128xf32> to vector<8x4xf32>
    %cst_79 = arith.constant dense<0.000000e+00> : vector<8x512xf32>
    %208 = tpu.matmul %207, %206, %cst_79 {dimension_numbers = #tpu.dot_dimension_numbers<[1], [0], [0], [1], [0, 0, 1, 1], [], []>} : vector<8x4xf32>, vector<4x512xf32>, vector<8x512xf32> -> vector<8x512xf32>
    %209 = arith.addf %184, %208 : vector<8x512xf32>
    %210 = vector.extract_strided_slice %0 {offsets = [0, 34], sizes = [4, 512], strides = [1, 1]} : vector<4x546xf32> to vector<4x512xf32>
    %c1_i32_80 = arith.constant 1 : i32
    %211 = vector.broadcast %c1_i32_80 : i32 to vector<4x512xi32>
    %212 = arith.addi %6, %211 : vector<4x512xi32>
    %c0_i32_81 = arith.constant 0 : i32
    %213 = vector.broadcast %c0_i32_81 : i32 to vector<4x512xi32>
    %214 = arith.cmpi sge, %212, %213 : vector<4x512xi32>
    %c1_i32_82 = arith.constant 1 : i32
    %215 = vector.broadcast %c1_i32_82 : i32 to vector<4x512xi32>
    %216 = arith.addi %6, %215 : vector<4x512xi32>
    %c16_i32_83 = arith.constant 16 : i32
    %217 = vector.broadcast %c16_i32_83 : i32 to vector<4x512xi32>
    %218 = arith.cmpi slt, %216, %217 : vector<4x512xi32>
    %219 = arith.andi %214, %218 : vector<4x512xi1>
    %c1_i32_84 = arith.constant 1 : i32
    %220 = vector.broadcast %c1_i32_84 : i32 to vector<4x512xi32>
    %221 = arith.addi %8, %220 : vector<4x512xi32>
    %c0_i32_85 = arith.constant 0 : i32
    %222 = vector.broadcast %c0_i32_85 : i32 to vector<4x512xi32>
    %223 = arith.cmpi sge, %221, %222 : vector<4x512xi32>
    %224 = arith.andi %219, %223 : vector<4x512xi1>
    %c1_i32_86 = arith.constant 1 : i32
    %225 = vector.broadcast %c1_i32_86 : i32 to vector<4x512xi32>
    %226 = arith.addi %8, %225 : vector<4x512xi32>
    %c16_i32_87 = arith.constant 16 : i32
    %227 = vector.broadcast %c16_i32_87 : i32 to vector<4x512xi32>
    %228 = arith.cmpi slt, %226, %227 : vector<4x512xi32>
    %229 = arith.andi %224, %228 : vector<4x512xi1>
    %cst_88 = arith.constant 0.000000e+00 : f32
    %230 = vector.broadcast %cst_88 : f32 to vector<4x512xf32>
    %231 = arith.select %229, %210, %230 : vector<4x512xi1>, vector<4x512xf32>
    %232 = vector.extract_strided_slice %1 {offsets = [0, 32], sizes = [8, 4], strides = [1, 1]} : vector<8x128xf32> to vector<8x4xf32>
    %cst_89 = arith.constant dense<0.000000e+00> : vector<8x512xf32>
    %233 = tpu.matmul %232, %231, %cst_89 {dimension_numbers = #tpu.dot_dimension_numbers<[1], [0], [0], [1], [0, 0, 1, 1], [], []>} : vector<8x4xf32>, vector<4x512xf32>, vector<8x512xf32> -> vector<8x512xf32>
    %234 = arith.addf %209, %233 : vector<8x512xf32>
    %235 = vector.extract_strided_slice %1 {offsets = [0, 36], sizes = [8, 1], strides = [1, 1]} : vector<8x128xf32> to vector<8x1xf32>
    %236 = vector.broadcast %235 : vector<8x1xf32> to vector<8x512xf32>
    %237 = arith.addf %234, %236 : vector<8x512xf32>
    %cst_90 = arith.constant 0.000000e+00 : f32
    %238 = vector.broadcast %cst_90 : f32 to vector<8x512xf32>
    %239 = arith.maximumf %237, %238 : vector<8x512xf32>
    %240 = tpu.iota {dimensions = array<i32: 0>} : vector<512x128xi32>
    %241 = tpu.iota {dimensions = array<i32: 1>} : vector<512x128xi32>
    %c8_i32 = arith.constant 8 : i32
    %242 = vector.broadcast %c8_i32 : i32 to vector<512x128xi32>
    %243 = arith.shrsi %240, %242 : vector<512x128xi32>
    %244 = arith.cmpi eq, %243, %241 : vector<512x128xi32>
    %cst_91 = arith.constant 3.906250e-03 : f32
    %cst_92 = arith.constant 0.000000e+00 : f32
    %245 = vector.broadcast %cst_91 : f32 to vector<512x128xf32>
    %246 = vector.broadcast %cst_92 : f32 to vector<512x128xf32>
    %247 = arith.select %244, %245, %246 : vector<512x128xi1>, vector<512x128xf32>
    %cst_93 = arith.constant dense<0.000000e+00> : vector<8x128xf32>
    %248 = tpu.matmul %239, %247, %cst_93 {dimension_numbers = #tpu.dot_dimension_numbers<[1], [0], [0], [1], [0, 0, 1, 1], [], []>} : vector<8x512xf32>, vector<512x128xf32>, vector<8x128xf32> -> vector<8x128xf32>
    %249 = vector.extract_strided_slice %1 {offsets = [0, 40], sizes = [8, 8], strides = [1, 1]} : vector<8x128xf32> to vector<8x8xf32>
    %250 = vector.extract_strided_slice %1 {offsets = [0, 48], sizes = [8, 1], strides = [1, 1]} : vector<8x128xf32> to vector<8x1xf32>
    %cst_94 = arith.constant dense<0.000000e+00> : vector<8x128xf32>
    %251 = tpu.matmul %249, %248, %cst_94 {dimension_numbers = #tpu.dot_dimension_numbers<[1], [0], [0], [1], [0, 0, 1, 1], [], []>} : vector<8x8xf32>, vector<8x128xf32>, vector<8x128xf32> -> vector<8x128xf32>
    %252 = vector.broadcast %250 : vector<8x1xf32> to vector<8x128xf32>
    %253 = arith.addf %251, %252 : vector<8x128xf32>
    %c0_95 = arith.constant 0 : index
    %c0_96 = arith.constant 0 : index
    %254 = vector.load %arg2[%c0_95, %c0_96] : memref<8x128xf32, #tpu.memory_space<vmem>>, vector<8x128xf32>
    tpu.vector_store %arg2[%c0_95, %c0_96], %253 {strides = array<i32>} : memref<8x128xf32, #tpu.memory_space<vmem>>, vector<8x128xf32>,
    return
  }
}

</mosaic_0001>

<llo_original>
// kernel: extractor_head.1
$region0: #{extractor_head.1}
  #allocation0 [shape = 'u32[]', space=smem, size = 0x4, offset = 0x4, fixed_abs, tag = 'smem constant byte address 0x4 - core index']
  #allocation1 [shape = 'u32[144,128]{1,0:T(1,128)}', space=vmem, size = 0x12000, scoped, tag = 'internal scratch']
  %s0 = inlined_call_operand.vmem [shape: f32[4,546], index: 0, kind: input, shape index: {}]
  %s1 = inlined_call_operand.vmem [shape: f32[8,128], index: 1, kind: input, shape index: {}]
  %s2 = inlined_call_operand.vmem [shape: f32[8,128], index: 2, kind: output, shape index: {}]
  %s3 = sld [smem:[#allocation0]]
  $region18: #{extractor_head.1} parent=0
    _
  %s5 = ssub.s32 1, %s3
  %s6 = scalar_select 0, %s5, %s3
  // Predicated region
  $region2: #{extractor_head.1} parent=0 // pred_check
    _
  $region3: #{extractor_head.1} parent=0 // pred_check_branch
    %8 = sbr.rel (0) target = $region5
  $region4: #{extractor_head.1} parent=0 // pred_region
    _
  $region5: #{extractor_head.1} parent=0 // pred_fallthru
    _
  // Predicated region
  $region6: #{extractor_head.1} parent=0 // pred_check
    _
  $region7: #{extractor_head.1} parent=0 // pred_check_branch
    %10 = sbr.rel (0) target = $region9
  $region8: #{extractor_head.1} parent=0 // pred_region
    _
  $region9: #{extractor_head.1} parent=0 // pred_fallthru
    _
  %v11 = vld [vmem:[%s0] sm:$0xff]
  %v12 = vld [vmem:[%s0 + $0x8] sm:$0xff]
  %v13 = vld [vmem:[%s0 + $0x10] sm:$0xf]
  %v14 = vld [vmem:[%s1] sm:$0xff]
  %v15 = vlaneseq
  %v16 = vand.u32 %v15, 127
  %v17 = vadd.s32 %v16, 128
  %v18 = vadd.s32 %v16, 256
  %v19 = vadd.s32 %v16, 384
  %v20 = vshra.s32 %v16, 4
  %v21 = vshra.s32 %v17, 4
  %v22 = vshra.s32 %v18, 4
  %v23 = vshra.s32 %v19, 4
  %v24 = vand.u32 %v20, 15
  %v25 = vand.u32 %v21, 15
  %v26 = vand.u32 %v22, 15
  %v27 = vand.u32 %v23, 15
  %v28 = vand.u32 %v16, 15
  %v29 = vand.u32 %v17, 15
  %v30 = vand.u32 %v18, 15
  %v31 = vand.u32 %v19, 15
  %v32 = vadd.s32 %v24, 4294967295
  %v33 = vadd.s32 %v25, 4294967295
  %v34 = vadd.s32 %v26, 4294967295
  %v35 = vadd.s32 %v27, 4294967295
  %vm36 = vcmp.ge.s32.totalorder %v32, 0
  %vm37 = vcmp.ge.s32.totalorder %v33, 0
  %vm38 = vcmp.ge.s32.totalorder %v34, 0
  %vm39 = vcmp.ge.s32.totalorder %v35, 0
  %vm40 = vcmp.lt.s32.totalorder %v32, 16
  %vm41 = vcmp.lt.s32.totalorder %v33, 16
  %vm42 = vcmp.lt.s32.totalorder %v34, 16
  %vm43 = vcmp.lt.s32.totalorder %v35, 16
  %vm44 = vmand %vm36, %vm40
  %vm45 = vmand %vm37, %vm41
  %vm46 = vmand %vm38, %vm42
  %vm47 = vmand %vm39, %vm43
  %v48 = vadd.s32 %v28, 4294967295
  %v49 = vadd.s32 %v29, 4294967295
  %v50 = vadd.s32 %v30, 4294967295
  %v51 = vadd.s32 %v31, 4294967295
  %vm52 = vcmp.ge.s32.totalorder %v48, 0
  %vm53 = vcmp.ge.s32.totalorder %v49, 0
  %vm54 = vcmp.ge.s32.totalorder %v50, 0
  %vm55 = vcmp.ge.s32.totalorder %v51, 0
  %vm56 = vmand %vm44, %vm52
  %vm57 = vmand %vm45, %vm53
  %vm58 = vmand %vm46, %vm54
  %vm59 = vmand %vm47, %vm55
  %vm60 = vcmp.lt.s32.totalorder %v48, 16
  %vm61 = vcmp.lt.s32.totalorder %v49, 16
  %vm62 = vcmp.lt.s32.totalorder %v50, 16
  %vm63 = vcmp.lt.s32.totalorder %v51, 16
  %vm64 = vmand %vm56, %vm60
  %vm65 = vmand %vm57, %vm61
  %vm66 = vmand %vm58, %vm62
  %vm67 = vmand %vm59, %vm63
  %v70 = vcombine.high %v11, %v11
  %v71 = vcombine.high %v12, %v12
  %v74 = vsel %vm64, %v11, 0.0
  %v75 = vsel %vm65, %v70, 0.0
  %v76 = vsel %vm66, %v12, 0.0
  %v77 = vsel %vm67, %v71, 0.0
  %vm78 = vcmp.ge.s32.totalorder %v28, 0
  %vm79 = vcmp.ge.s32.totalorder %v29, 0
  %vm80 = vcmp.ge.s32.totalorder %v30, 0
  %vm81 = vcmp.ge.s32.totalorder %v31, 0
  %vm82 = vmand %vm44, %vm78
  %vm83 = vmand %vm45, %vm79
  %vm84 = vmand %vm46, %vm80
  %vm85 = vmand %vm47, %vm81
  %vm86 = vcmp.lt.s32.totalorder %v28, 16
  %vm87 = vcmp.lt.s32.totalorder %v29, 16
  %vm88 = vcmp.lt.s32.totalorder %v30, 16
  %vm89 = vcmp.lt.s32.totalorder %v31, 16
  %vm90 = vmand %vm82, %vm86
  %vm91 = vmand %vm83, %vm87
  %vm92 = vmand %vm84, %vm88
  %vm93 = vmand %vm85, %vm89
  %95 = vrot.lane.b32.xlu0 %v11, 127
  %v96 = vpop.permute.xlu0 %95
  %97 = vrot.lane.b32.xlu0 %v70, 127
  %v98 = vpop.permute.xlu0 %97
  %99 = vrot.lane.b32.xlu0 %v12, 127
  %v100 = vpop.permute.xlu0 %99
  %101 = vrot.lane.b32.xlu0 %v71, 127
  %v102 = vpop.permute.xlu0 %101
  %103 = vrot.lane.b32.xlu0 %v13, 127
  %v104 = vpop.permute.xlu0 %103
  %vm105 = vcmask 1039360
  %v106 = vsel %vm105, %v96, %v98
  %v107 = vsel %vm105, %v98, %v100
  %v108 = vsel %vm105, %v100, %v102
  %v109 = vsel %vm105, %v102, %v104
  %v114 = vsel %vm90, %v106, 0.0
  %v115 = vsel %vm91, %v107, 0.0
  %v116 = vsel %vm92, %v108, 0.0
  %v117 = vsel %vm93, %v109, 0.0
  %119 = vrot.lane.b32.xlu0 %v14, 124
  %v120 = vpop.permute.xlu0 %119
  %vm121 = vcmask 31744
  %v122 = vsel %vm121, %v120, 0
  %vm124 = vcmask 1043456
  %v126 = vsel %vm124, %v114, 0
  %v129 = vsel %vm124, %v115, 0
  %v132 = vsel %vm124, %v116, 0
  %v135 = vsel %vm124, %v117, 0
  %137 = vmatprep.subr.mxu0 %v129
  %138 = vmatpush1.msra.mxu0 %v126
  %139 = vmatprep.subr.mxu0 0.0
  %140 = vmatpush1.msra.mxu0 0.0
  %141 = vmatprep.subr.mxu0 0.0
  %142 = vmatpush1.msra.mxu0 0.0
  %143 = vmatprep.subr.mxu0 0.0
  %144 = vmatpush1.msra.mxu0 0.0
  %145 = vmatprep.subr.mxu0 0.0
  %146 = vmatpush1.msra.mxu0 0.0
  %147 = vmatprep.subr.mxu0 0.0
  %148 = vmatpush1.msra.mxu0 0.0
  %149 = vmatprep.subr.mxu0 0.0
  %150 = vmatpush1.msra.mxu0 0.0
  %151 = vmatprep.subr.mxu0 0.0
  %152 = vmatpush1.msra.mxu0 0.0
  %153 = vmatprep.subr.mxu0 0.0
  %154 = vmatpush1.msra.mxu0 0.0
  %155 = vmatprep.subr.mxu0 0.0
  %156 = vmatpush1.msra.mxu0 0.0
  %157 = vmatprep.subr.mxu0 0.0
  %158 = vmatpush1.msra.mxu0 0.0
  %159 = vmatprep.subr.mxu0 0.0
  %160 = vmatpush1.msra.mxu0 0.0
  %161 = vmatprep.subr.mxu0 0.0
  %162 = vmatpush1.msra.mxu0 0.0
  %163 = vmatprep.subr.mxu0 0.0
  %164 = vmatpush1.msra.mxu0 0.0
  %165 = vmatprep.subr.mxu0 0.0
  %166 = vmatpush1.msra.mxu0 0.0
  %167 = vmatprep.subr.mxu0 0.0
  %168 = vmatpush1.msra.mxu0 0.0
  %169 = vmatprep.subr.mxu0 0.0
  %170 = vmatpush1.msra.mxu0 0.0
  %171 = vmatprep.subr.mxu0 0.0
  %172 = vmatpush1.msra.mxu0 0.0
  %173 = vmatprep.subr.mxu0 0.0
  %174 = vmatpush1.msra.mxu0 0.0
  %175 = vmatprep.subr.mxu0 0.0
  %176 = vmatpush1.msra.mxu0 0.0
  %177 = vmatprep.subr.mxu0 0.0
  %178 = vmatpush1.msra.mxu0 0.0
  %179 = vmatprep.subr.mxu0 0.0
  %180 = vmatpush1.msra.mxu0 0.0
  %181 = vmatprep.subr.mxu0 0.0
  %182 = vmatpush1.msra.mxu0 0.0
  %183 = vmatprep.subr.mxu0 0.0
  %184 = vmatpush1.msra.mxu0 0.0
  %185 = vmatprep.subr.mxu0 0.0
  %186 = vmatpush1.msra.mxu0 0.0
  %187 = vmatprep.subr.mxu0 0.0
  %188 = vmatpush1.msra.mxu0 0.0
  %189 = vmatprep.subr.mxu0 0.0
  %190 = vmatpush1.msra.mxu0 0.0
  %191 = vmatprep.subr.mxu0 0.0
  %192 = vmatpush1.msra.mxu0 0.0
  %193 = vmatprep.subr.mxu0 0.0
  %194 = vmatpush1.msra.mxu0 0.0
  %195 = vmatprep.subr.mxu0 0.0
  %196 = vmatpush1.msra.mxu0 0.0
  %197 = vmatprep.subr.mxu0 0.0
  %198 = vmatpush1.msra.mxu0 0.0
  %199 = vmatprep.subr.mxu0 0.0
  %200 = vmatpush1.msra.mxu0 0.0
  %201 = vmatprep.mubr.f32.mxu0 0.0
  %202 = vmatmul.mubr.f32.gmra.mrb[0].mxu0 %v122
  %v203 = vpop.f32.mrb[0].mxu0
  %v204 = vadd.f32 0.0, %v203
  %v205 = vpop.f32.mrb[0].mxu0
  %v206 = vadd.f32 0.0, %v205
  %207 = vdwg.mxu0
  %208 = vmatprep.subr.mxu0 %v135
  %209 = vmatpush1.msra.mxu0 %v132
  %210 = vmatprep.subr.mxu0 0.0
  %211 = vmatpush1.msra.mxu0 0.0
  %212 = vmatprep.subr.mxu0 0.0
  %213 = vmatpush1.msra.mxu0 0.0
  %214 = vmatprep.subr.mxu0 0.0
  %215 = vmatpush1.msra.mxu0 0.0
  %216 = vmatprep.subr.mxu0 0.0
  %217 = vmatpush1.msra.mxu0 0.0
  %218 = vmatprep.subr.mxu0 0.0
  %219 = vmatpush1.msra.mxu0 0.0
  %220 = vmatprep.subr.mxu0 0.0
  %221 = vmatpush1.msra.mxu0 0.0
  %222 = vmatprep.subr.mxu0 0.0
  %223 = vmatpush1.msra.mxu0 0.0
  %224 = vmatprep.subr.mxu0 0.0
  %225 = vmatpush1.msra.mxu0 0.0
  %226 = vmatprep.subr.mxu0 0.0
  %227 = vmatpush1.msra.mxu0 0.0
  %228 = vmatprep.subr.mxu0 0.0
  %229 = vmatpush1.msra.mxu0 0.0
  %230 = vmatprep.subr.mxu0 0.0
  %231 = vmatpush1.msra.mxu0 0.0
  %232 = vmatprep.subr.mxu0 0.0
  %233 = vmatpush1.msra.mxu0 0.0
  %234 = vmatprep.subr.mxu0 0.0
  %235 = vmatpush1.msra.mxu0 0.0
  %236 = vmatprep.subr.mxu0 0.0
  %237 = vmatpush1.msra.mxu0 0.0
  %238 = vmatprep.subr.mxu0 0.0
  %239 = vmatpush1.msra.mxu0 0.0
  %240 = vmatprep.subr.mxu0 0.0
  %241 = vmatpush1.msra.mxu0 0.0
  %242 = vmatprep.subr.mxu0 0.0
  %243 = vmatpush1.msra.mxu0 0.0
  %244 = vmatprep.subr.mxu0 0.0
  %245 = vmatpush1.msra.mxu0 0.0
  %246 = vmatprep.subr.mxu0 0.0
  %247 = vmatpush1.msra.mxu0 0.0
  %248 = vmatprep.subr.mxu0 0.0
  %249 = vmatpush1.msra.mxu0 0.0
  %250 = vmatprep.subr.mxu0 0.0
  %251 = vmatpush1.msra.mxu0 0.0
  %252 = vmatprep.subr.mxu0 0.0
  %253 = vmatpush1.msra.mxu0 0.0
  %254 = vmatprep.subr.mxu0 0.0
  %255 = vmatpush1.msra.mxu0 0.0
  %256 = vmatprep.subr.mxu0 0.0
  %257 = vmatpush1.msra.mxu0 0.0
  %258 = vmatprep.subr.mxu0 0.0
  %259 = vmatpush1.msra.mxu0 0.0
  %260 = vmatprep.subr.mxu0 0.0
  %261 = vmatpush1.msra.mxu0 0.0
  %262 = vmatprep.subr.mxu0 0.0
  %263 = vmatpush1.msra.mxu0 0.0
  %264 = vmatprep.subr.mxu0 0.0
  %265 = vmatpush1.msra.mxu0 0.0
  %266 = vmatprep.subr.mxu0 0.0
  %267 = vmatpush1.msra.mxu0 0.0
  %268 = vmatprep.subr.mxu0 0.0
  %269 = vmatpush1.msra.mxu0 0.0
  %270 = vmatprep.subr.mxu0 0.0
  %271 = vmatpush1.msra.mxu0 0.0
  %272 = vmatprep.mubr.f32.mxu0 0.0
  %273 = vmatmul.mubr.f32.gmra.mrb[0].mxu0 %v122
  %v274 = vpop.f32.mrb[0].mxu0
  %v275 = vadd.f32 0.0, %v274
  %v276 = vpop.f32.mrb[0].mxu0
  %v277 = vadd.f32 0.0, %v276
  %278 = vdwg.mxu0
  %v279 = vsel %vm121, %v14, 0
  %v282 = vsel %vm124, %v74, 0
  %v285 = vsel %vm124, %v75, 0
  %v288 = vsel %vm124, %v76, 0
  %v291 = vsel %vm124, %v77, 0
  %293 = vmatprep.subr.mxu0 %v285
  %294 = vmatpush1.msra.mxu0 %v282
  %295 = vmatprep.subr.mxu0 0.0
  %296 = vmatpush1.msra.mxu0 0.0
  %297 = vmatprep.subr.mxu0 0.0
  %298 = vmatpush1.msra.mxu0 0.0
  %299 = vmatprep.subr.mxu0 0.0
  %300 = vmatpush1.msra.mxu0 0.0
  %301 = vmatprep.subr.mxu0 0.0
  %302 = vmatpush1.msra.mxu0 0.0
  %303 = vmatprep.subr.mxu0 0.0
  %304 = vmatpush1.msra.mxu0 0.0
  %305 = vmatprep.subr.mxu0 0.0
  %306 = vmatpush1.msra.mxu0 0.0
  %307 = vmatprep.subr.mxu0 0.0
  %308 = vmatpush1.msra.mxu0 0.0
  %309 = vmatprep.subr.mxu0 0.0
  %310 = vmatpush1.msra.mxu0 0.0
  %311 = vmatprep.subr.mxu0 0.0
  %312 = vmatpush1.msra.mxu0 0.0
  %313 = vmatprep.subr.mxu0 0.0
  %314 = vmatpush1.msra.mxu0 0.0
  %315 = vmatprep.subr.mxu0 0.0
  %316 = vmatpush1.msra.mxu0 0.0
  %317 = vmatprep.subr.mxu0 0.0
  %318 = vmatpush1.msra.mxu0 0.0
  %319 = vmatprep.subr.mxu0 0.0
  %320 = vmatpush1.msra.mxu0 0.0
  %321 = vmatprep.subr.mxu0 0.0
  %322 = vmatpush1.msra.mxu0 0.0
  %323 = vmatprep.subr.mxu0 0.0
  %324 = vmatpush1.msra.mxu0 0.0
  %325 = vmatprep.subr.mxu0 0.0
  %326 = vmatpush1.msra.mxu0 0.0
  %327 = vmatprep.subr.mxu0 0.0
  %328 = vmatpush1.msra.mxu0 0.0
  %329 = vmatprep.subr.mxu0 0.0
  %330 = vmatpush1.msra.mxu0 0.0
  %331 = vmatprep.subr.mxu0 0.0
  %332 = vmatpush1.msra.mxu0 0.0
  %333 = vmatprep.subr.mxu0 0.0
  %334 = vmatpush1.msra.mxu0 0.0
  %335 = vmatprep.subr.mxu0 0.0
  %336 = vmatpush1.msra.mxu0 0.0
  %337 = vmatprep.subr.mxu0 0.0
  %338 = vmatpush1.msra.mxu0 0.0
  %339 = vmatprep.subr.mxu0 0.0
  %340 = vmatpush1.msra.mxu0 0.0
  %341 = vmatprep.subr.mxu0 0.0
  %342 = vmatpush1.msra.mxu0 0.0
  %343 = vmatprep.subr.mxu0 0.0
  %344 = vmatpush1.msra.mxu0 0.0
  %345 = vmatprep.subr.mxu0 0.0
  %346 = vmatpush1.msra.mxu0 0.0
  %347 = vmatprep.subr.mxu0 0.0
  %348 = vmatpush1.msra.mxu0 0.0
  %349 = vmatprep.subr.mxu0 0.0
  %350 = vmatpush1.msra.mxu0 0.0
  %351 = vmatprep.subr.mxu0 0.0
  %352 = vmatpush1.msra.mxu0 0.0
  %353 = vmatprep.subr.mxu0 0.0
  %354 = vmatpush1.msra.mxu0 0.0
  %355 = vmatprep.subr.mxu0 0.0
  %356 = vmatpush1.msra.mxu0 0.0
  %357 = vmatprep.mubr.f32.mxu0 0.0
  %358 = vmatmul.mubr.f32.gmra.mrb[0].mxu0 %v279
  %v359 = vpop.f32.mrb[0].mxu0
  %v360 = vadd.f32 %v204, %v359
  %v361 = vpop.f32.mrb[0].mxu0
  %v362 = vadd.f32 %v206, %v361
  %363 = vdwg.mxu0
  %364 = vmatprep.subr.mxu0 %v291
  %365 = vmatpush1.msra.mxu0 %v288
  %366 = vmatprep.subr.mxu0 0.0
  %367 = vmatpush1.msra.mxu0 0.0
  %368 = vmatprep.subr.mxu0 0.0
  %369 = vmatpush1.msra.mxu0 0.0
  %370 = vmatprep.subr.mxu0 0.0
  %371 = vmatpush1.msra.mxu0 0.0
  %372 = vmatprep.subr.mxu0 0.0
  %373 = vmatpush1.msra.mxu0 0.0
  %374 = vmatprep.subr.mxu0 0.0
  %375 = vmatpush1.msra.mxu0 0.0
  %376 = vmatprep.subr.mxu0 0.0
  %377 = vmatpush1.msra.mxu0 0.0
  %378 = vmatprep.subr.mxu0 0.0
  %379 = vmatpush1.msra.mxu0 0.0
  %380 = vmatprep.subr.mxu0 0.0
  %381 = vmatpush1.msra.mxu0 0.0
  %382 = vmatprep.subr.mxu0 0.0
  %383 = vmatpush1.msra.mxu0 0.0
  %384 = vmatprep.subr.mxu0 0.0
  %385 = vmatpush1.msra.mxu0 0.0
  %386 = vmatprep.subr.mxu0 0.0
  %387 = vmatpush1.msra.mxu0 0.0
  %388 = vmatprep.subr.mxu0 0.0
  %389 = vmatpush1.msra.mxu0 0.0
  %390 = vmatprep.subr.mxu0 0.0
  %391 = vmatpush1.msra.mxu0 0.0
  %392 = vmatprep.subr.mxu0 0.0
  %393 = vmatpush1.msra.mxu0 0.0
  %394 = vmatprep.subr.mxu0 0.0
  %395 = vmatpush1.msra.mxu0 0.0
  %396 = vmatprep.subr.mxu0 0.0
  %397 = vmatpush1.msra.mxu0 0.0
  %398 = vmatprep.subr.mxu0 0.0
  %399 = vmatpush1.msra.mxu0 0.0
  %400 = vmatprep.subr.mxu0 0.0
  %401 = vmatpush1.msra.mxu0 0.0
  %402 = vmatprep.subr.mxu0 0.0
  %403 = vmatpush1.msra.mxu0 0.0
  %404 = vmatprep.subr.mxu0 0.0
  %405 = vmatpush1.msra.mxu0 0.0
  %406 = vmatprep.subr.mxu0 0.0
  %407 = vmatpush1.msra.mxu0 0.0
  %408 = vmatprep.subr.mxu0 0.0
  %409 = vmatpush1.msra.mxu0 0.0
  %410 = vmatprep.subr.mxu0 0.0
  %411 = vmatpush1.msra.mxu0 0.0
  %412 = vmatprep.subr.mxu0 0.0
  %413 = vmatpush1.msra.mxu0 0.0
  %414 = vmatprep.subr.mxu0 0.0
  %415 = vmatpush1.msra.mxu0 0.0
  %416 = vmatprep.subr.mxu0 0.0
  %417 = vmatpush1.msra.mxu0 0.0
  %418 = vmatprep.subr.mxu0 0.0
  %419 = vmatpush1.msra.mxu0 0.0
  %420 = vmatprep.subr.mxu0 0.0
  %421 = vmatpush1.msra.mxu0 0.0
  %422 = vmatprep.subr.mxu0 0.0
  %423 = vmatpush1.msra.mxu0 0.0
  %424 = vmatprep.subr.mxu0 0.0
  %425 = vmatpush1.msra.mxu0 0.0
  %426 = vmatprep.subr.mxu0 0.0
  %427 = vmatpush1.msra.mxu0 0.0
  %428 = vmatprep.mubr.f32.mxu0 0.0
  %429 = vmatmul.mubr.f32.gmra.mrb[0].mxu0 %v279
  %v430 = vpop.f32.mrb[0].mxu0
  %v431 = vadd.f32 %v275, %v430
  %v432 = vpop.f32.mrb[0].mxu0
  %v433 = vadd.f32 %v277, %v432
  %434 = vdwg.mxu0
  %v435 = vadd.s32 %v28, 1
  %v436 = vadd.s32 %v29, 1
  %v437 = vadd.s32 %v30, 1
  %v438 = vadd.s32 %v31, 1
  %vm439 = vcmp.ge.s32.totalorder %v435, 0
  %vm440 = vcmp.ge.s32.totalorder %v436, 0
  %vm441 = vcmp.ge.s32.totalorder %v437, 0
  %vm442 = vcmp.ge.s32.totalorder %v438, 0
  %vm443 = vmand %vm44, %vm439
  %vm444 = vmand %vm45, %vm440
  %vm445 = vmand %vm46, %vm441
  %vm446 = vmand %vm47, %vm442
  %vm447 = vcmp.lt.s32.totalorder %v435, 16
  %vm448 = vcmp.lt.s32.totalorder %v436, 16
  %vm449 = vcmp.lt.s32.totalorder %v437, 16
  %vm450 = vcmp.lt.s32.totalorder %v438, 16
  %vm451 = vmand %vm443, %vm447
  %vm452 = vmand %vm444, %vm448
  %vm453 = vmand %vm445, %vm449
  %vm454 = vmand %vm446, %vm450
  %455 = vrot.lane.b32.xlu0 %v11, 126
  %v456 = vpop.permute.xlu0 %455
  %457 = vrot.lane.b32.xlu0 %v70, 126
  %v458 = vpop.permute.xlu0 %457
  %459 = vrot.lane.b32.xlu0 %v12, 126
  %v460 = vpop.permute.xlu0 %459
  %461 = vrot.lane.b32.xlu0 %v71, 126
  %v462 = vpop.permute.xlu0 %461
  %463 = vrot.lane.b32.xlu0 %v13, 126
  %v464 = vpop.permute.xlu0 %463
  %vm465 = vcmask 1031168
  %v466 = vsel %vm465, %v456, %v458
  %v467 = vsel %vm465, %v458, %v460
  %v468 = vsel %vm465, %v460, %v462
  %v469 = vsel %vm465, %v462, %v464
  %v474 = vsel %vm451, %v466, 0.0
  %v475 = vsel %vm452, %v467, 0.0
  %v476 = vsel %vm453, %v468, 0.0
  %v477 = vsel %vm454, %v469, 0.0
  %478 = vrot.lane.b32.xlu0 %v14, 120
  %v479 = vpop.permute.xlu0 %478
  %v480 = vsel %vm121, %v479, 0
  %v483 = vsel %vm124, %v474, 0
  %v486 = vsel %vm124, %v475, 0
  %v489 = vsel %vm124, %v476, 0
  %v492 = vsel %vm124, %v477, 0
  %494 = vmatprep.subr.mxu0 %v486
  %495 = vmatpush1.msra.mxu0 %v483
  %496 = vmatprep.subr.mxu0 0.0
  %497 = vmatpush1.msra.mxu0 0.0
  %498 = vmatprep.subr.mxu0 0.0
  %499 = vmatpush1.msra.mxu0 0.0
  %500 = vmatprep.subr.mxu0 0.0
  %501 = vmatpush1.msra.mxu0 0.0
  %502 = vmatprep.subr.mxu0 0.0
  %503 = vmatpush1.msra.mxu0 0.0
  %504 = vmatprep.subr.mxu0 0.0
  %505 = vmatpush1.msra.mxu0 0.0
  %506 = vmatprep.subr.mxu0 0.0
  %507 = vmatpush1.msra.mxu0 0.0
  %508 = vmatprep.subr.mxu0 0.0
  %509 = vmatpush1.msra.mxu0 0.0
  %510 = vmatprep.subr.mxu0 0.0
  %511 = vmatpush1.msra.mxu0 0.0
  %512 = vmatprep.subr.mxu0 0.0
  %513 = vmatpush1.msra.mxu0 0.0
  %514 = vmatprep.subr.mxu0 0.0
  %515 = vmatpush1.msra.mxu0 0.0
  %516 = vmatprep.subr.mxu0 0.0
  %517 = vmatpush1.msra.mxu0 0.0
  %518 = vmatprep.subr.mxu0 0.0
  %519 = vmatpush1.msra.mxu0 0.0
  %520 = vmatprep.subr.mxu0 0.0
  %521 = vmatpush1.msra.mxu0 0.0
  %522 = vmatprep.subr.mxu0 0.0
  %523 = vmatpush1.msra.mxu0 0.0
  %524 = vmatprep.subr.mxu0 0.0
  %525 = vmatpush1.msra.mxu0 0.0
  %526 = vmatprep.subr.mxu0 0.0
  %527 = vmatpush1.msra.mxu0 0.0
  %528 = vmatprep.subr.mxu0 0.0
  %529 = vmatpush1.msra.mxu0 0.0
  %530 = vmatprep.subr.mxu0 0.0
  %531 = vmatpush1.msra.mxu0 0.0
  %532 = vmatprep.subr.mxu0 0.0
  %533 = vmatpush1.msra.mxu0 0.0
  %534 = vmatprep.subr.mxu0 0.0
  %535 = vmatpush1.msra.mxu0 0.0
  %536 = vmatprep.subr.mxu0 0.0
  %537 = vmatpush1.msra.mxu0 0.0
  %538 = vmatprep.subr.mxu0 0.0
  %539 = vmatpush1.msra.mxu0 0.0
  %540 = vmatprep.subr.mxu0 0.0
  %541 = vmatpush1.msra.mxu0 0.0
  %542 = vmatprep.subr.mxu0 0.0
  %543 = vmatpush1.msra.mxu0 0.0
  %544 = vmatprep.subr.mxu0 0.0
  %545 = vmatpush1.msra.mxu0 0.0
  %546 = vmatprep.subr.mxu0 0.0
  %547 = vmatpush1.msra.mxu0 0.0
  %548 = vmatprep.subr.mxu0 0.0
  %549 = vmatpush1.msra.mxu0 0.0
  %550 = vmatprep.subr.mxu0 0.0
  %551 = vmatpush1.msra.mxu0 0.0
  %552 = vmatprep.subr.mxu0 0.0
  %553 = vmatpush1.msra.mxu0 0.0
  %554 = vmatprep.subr.mxu0 0.0
  %555 = vmatpush1.msra.mxu0 0.0
  %556 = vmatprep.subr.mxu0 0.0
  %557 = vmatpush1.msra.mxu0 0.0
  %558 = vmatprep.mubr.f32.mxu0 0.0
  %559 = vmatmul.mubr.f32.gmra.mrb[0].mxu0 %v480
  %v560 = vpop.f32.mrb[0].mxu0
  %v561 = vadd.f32 0.0, %v560
  %v562 = vpop.f32.mrb[0].mxu0
  %v563 = vadd.f32 0.0, %v562
  %564 = vdwg.mxu0
  %565 = vmatprep.subr.mxu0 %v492
  %566 = vmatpush1.msra.mxu0 %v489
  %567 = vmatprep.subr.mxu0 0.0
  %568 = vmatpush1.msra.mxu0 0.0
  %569 = vmatprep.subr.mxu0 0.0
  %570 = vmatpush1.msra.mxu0 0.0
  %571 = vmatprep.subr.mxu0 0.0
  %572 = vmatpush1.msra.mxu0 0.0
  %573 = vmatprep.subr.mxu0 0.0
  %574 = vmatpush1.msra.mxu0 0.0
  %575 = vmatprep.subr.mxu0 0.0
  %576 = vmatpush1.msra.mxu0 0.0
  %577 = vmatprep.subr.mxu0 0.0
  %578 = vmatpush1.msra.mxu0 0.0
  %579 = vmatprep.subr.mxu0 0.0
  %580 = vmatpush1.msra.mxu0 0.0
  %581 = vmatprep.subr.mxu0 0.0
  %582 = vmatpush1.msra.mxu0 0.0
  %583 = vmatprep.subr.mxu0 0.0
  %584 = vmatpush1.msra.mxu0 0.0
  %585 = vmatprep.subr.mxu0 0.0
  %586 = vmatpush1.msra.mxu0 0.0
  %587 = vmatprep.subr.mxu0 0.0
  %588 = vmatpush1.msra.mxu0 0.0
  %589 = vmatprep.subr.mxu0 0.0
  %590 = vmatpush1.msra.mxu0 0.0
  %591 = vmatprep.subr.mxu0 0.0
  %592 = vmatpush1.msra.mxu0 0.0
  %593 = vmatprep.subr.mxu0 0.0
  %594 = vmatpush1.msra.mxu0 0.0
  %595 = vmatprep.subr.mxu0 0.0
  %596 = vmatpush1.msra.mxu0 0.0
  %597 = vmatprep.subr.mxu0 0.0
  %598 = vmatpush1.msra.mxu0 0.0
  %599 = vmatprep.subr.mxu0 0.0
  %600 = vmatpush1.msra.mxu0 0.0
  %601 = vmatprep.subr.mxu0 0.0
  %602 = vmatpush1.msra.mxu0 0.0
  %603 = vmatprep.subr.mxu0 0.0
  %604 = vmatpush1.msra.mxu0 0.0
  %605 = vmatprep.subr.mxu0 0.0
  %606 = vmatpush1.msra.mxu0 0.0
  %607 = vmatprep.subr.mxu0 0.0
  %608 = vmatpush1.msra.mxu0 0.0
  %609 = vmatprep.subr.mxu0 0.0
  %610 = vmatpush1.msra.mxu0 0.0
  %611 = vmatprep.subr.mxu0 0.0
  %612 = vmatpush1.msra.mxu0 0.0
  %613 = vmatprep.subr.mxu0 0.0
  %614 = vmatpush1.msra.mxu0 0.0
  %615 = vmatprep.subr.mxu0 0.0
  %616 = vmatpush1.msra.mxu0 0.0
  %617 = vmatprep.subr.mxu0 0.0
  %618 = vmatpush1.msra.mxu0 0.0
  %619 = vmatprep.subr.mxu0 0.0
  %620 = vmatpush1.msra.mxu0 0.0
  %621 = vmatprep.subr.mxu0 0.0
  %622 = vmatpush1.msra.mxu0 0.0
  %623 = vmatprep.subr.mxu0 0.0
  %624 = vmatpush1.msra.mxu0 0.0
  %625 = vmatprep.subr.mxu0 0.0
  %626 = vmatpush1.msra.mxu0 0.0
  %627 = vmatprep.subr.mxu0 0.0
  %628 = vmatpush1.msra.mxu0 0.0
  %629 = vmatprep.mubr.f32.mxu0 0.0
  %630 = vmatmul.mubr.f32.gmra.mrb[0].mxu0 %v480
  %v631 = vpop.f32.mrb[0].mxu0
  %v632 = vadd.f32 0.0, %v631
  %v633 = vpop.f32.mrb[0].mxu0
  %v634 = vadd.f32 0.0, %v633
  %635 = vdwg.mxu0
  %v636 = vadd.f32 %v360, %v561
  %v637 = vadd.f32 %v362, %v563
  %v638 = vadd.f32 %v431, %v632
  %v639 = vadd.f32 %v433, %v634
  %vm640 = vcmp.ge.s32.totalorder %v24, 0
  %vm641 = vcmp.ge.s32.totalorder %v25, 0
  %vm642 = vcmp.ge.s32.totalorder %v26, 0
  %vm643 = vcmp.ge.s32.totalorder %v27, 0
  %vm644 = vcmp.lt.s32.totalorder %v24, 16
  %vm645 = vcmp.lt.s32.totalorder %v25, 16
  %vm646 = vcmp.lt.s32.totalorder %v26, 16
  %vm647 = vcmp.lt.s32.totalorder %v27, 16
  %vm648 = vmand %vm640, %vm644
  %vm649 = vmand %vm641, %vm645
  %vm650 = vmand %vm642, %vm646
  %vm651 = vmand %vm643, %vm647
  %vm652 = vmand %vm648, %vm52
  %vm653 = vmand %vm649, %vm53
  %vm654 = vmand %vm650, %vm54
  %vm655 = vmand %vm651, %vm55
  %vm656 = vmand %vm652, %vm60
  %vm657 = vmand %vm653, %vm61
  %vm658 = vmand %vm654, %vm62
  %vm659 = vmand %vm655, %vm63
  %660 = vrot.lane.b32.xlu0 %v11, 112
  %v661 = vpop.permute.xlu0 %660
  %662 = vrot.lane.b32.xlu0 %v70, 112
  %v663 = vpop.permute.xlu0 %662
  %664 = vrot.lane.b32.xlu0 %v12, 112
  %v665 = vpop.permute.xlu0 %664
  %666 = vrot.lane.b32.xlu0 %v71, 112
  %v667 = vpop.permute.xlu0 %666
  %668 = vrot.lane.b32.xlu0 %v13, 112
  %v669 = vpop.permute.xlu0 %668
  %vm670 = vcmask 916480
  %v671 = vsel %vm670, %v661, %v663
  %v672 = vsel %vm670, %v663, %v665
  %v673 = vsel %vm670, %v665, %v667
  %v674 = vsel %vm670, %v667, %v669
  %v679 = vsel %vm656, %v671, 0.0
  %v680 = vsel %vm657, %v672, 0.0
  %v681 = vsel %vm658, %v673, 0.0
  %v682 = vsel %vm659, %v674, 0.0
  %683 = vrot.lane.b32.xlu0 %v14, 116
  %v684 = vpop.permute.xlu0 %683
  %v685 = vsel %vm121, %v684, 0
  %v688 = vsel %vm124, %v679, 0
  %v691 = vsel %vm124, %v680, 0
  %v694 = vsel %vm124, %v681, 0
  %v697 = vsel %vm124, %v682, 0
  %699 = vmatprep.subr.mxu0 %v691
  %700 = vmatpush1.msra.mxu0 %v688
  %701 = vmatprep.subr.mxu0 0.0
  %702 = vmatpush1.msra.mxu0 0.0
  %703 = vmatprep.subr.mxu0 0.0
  %704 = vmatpush1.msra.mxu0 0.0
  %705 = vmatprep.subr.mxu0 0.0
  %706 = vmatpush1.msra.mxu0 0.0
  %707 = vmatprep.subr.mxu0 0.0
  %708 = vmatpush1.msra.mxu0 0.0
  %709 = vmatprep.subr.mxu0 0.0
  %710 = vmatpush1.msra.mxu0 0.0
  %711 = vmatprep.subr.mxu0 0.0
  %712 = vmatpush1.msra.mxu0 0.0
  %713 = vmatprep.subr.mxu0 0.0
  %714 = vmatpush1.msra.mxu0 0.0
  %715 = vmatprep.subr.mxu0 0.0
  %716 = vmatpush1.msra.mxu0 0.0
  %717 = vmatprep.subr.mxu0 0.0
  %718 = vmatpush1.msra.mxu0 0.0
  %719 = vmatprep.subr.mxu0 0.0
  %720 = vmatpush1.msra.mxu0 0.0
  %721 = vmatprep.subr.mxu0 0.0
  %722 = vmatpush1.msra.mxu0 0.0
  %723 = vmatprep.subr.mxu0 0.0
  %724 = vmatpush1.msra.mxu0 0.0
  %725 = vmatprep.subr.mxu0 0.0
  %726 = vmatpush1.msra.mxu0 0.0
  %727 = vmatprep.subr.mxu0 0.0
  %728 = vmatpush1.msra.mxu0 0.0
  %729 = vmatprep.subr.mxu0 0.0
  %730 = vmatpush1.msra.mxu0 0.0
  %731 = vmatprep.subr.mxu0 0.0
  %732 = vmatpush1.msra.mxu0 0.0
  %733 = vmatprep.subr.mxu0 0.0
  %734 = vmatpush1.msra.mxu0 0.0
  %735 = vmatprep.subr.mxu0 0.0
  %736 = vmatpush1.msra.mxu0 0.0
  %737 = vmatprep.subr.mxu0 0.0
  %738 = vmatpush1.msra.mxu0 0.0
  %739 = vmatprep.subr.mxu0 0.0
  %740 = vmatpush1.msra.mxu0 0.0
  %741 = vmatprep.subr.mxu0 0.0
  %742 = vmatpush1.msra.mxu0 0.0
  %743 = vmatprep.subr.mxu0 0.0
  %744 = vmatpush1.msra.mxu0 0.0
  %745 = vmatprep.subr.mxu0 0.0
  %746 = vmatpush1.msra.mxu0 0.0
  %747 = vmatprep.subr.mxu0 0.0
  %748 = vmatpush1.msra.mxu0 0.0
  %749 = vmatprep.subr.mxu0 0.0
  %750 = vmatpush1.msra.mxu0 0.0
  %751 = vmatprep.subr.mxu0 0.0
  %752 = vmatpush1.msra.mxu0 0.0
  %753 = vmatprep.subr.mxu0 0.0
  %754 = vmatpush1.msra.mxu0 0.0
  %755 = vmatprep.subr.mxu0 0.0
  %756 = vmatpush1.msra.mxu0 0.0
  %757 = vmatprep.subr.mxu0 0.0
  %758 = vmatpush1.msra.mxu0 0.0
  %759 = vmatprep.subr.mxu0 0.0
  %760 = vmatpush1.msra.mxu0 0.0
  %761 = vmatprep.subr.mxu0 0.0
  %762 = vmatpush1.msra.mxu0 0.0
  %763 = vmatprep.mubr.f32.mxu0 0.0
  %764 = vmatmul.mubr.f32.gmra.mrb[0].mxu0 %v685
  %v765 = vpop.f32.mrb[0].mxu0
  %v766 = vadd.f32 0.0, %v765
  %v767 = vpop.f32.mrb[0].mxu0
  %v768 = vadd.f32 0.0, %v767
  %769 = vdwg.mxu0
  %770 = vmatprep.subr.mxu0 %v697
  %771 = vmatpush1.msra.mxu0 %v694
  %772 = vmatprep.subr.mxu0 0.0
  %773 = vmatpush1.msra.mxu0 0.0
  %774 = vmatprep.subr.mxu0 0.0
  %775 = vmatpush1.msra.mxu0 0.0
  %776 = vmatprep.subr.mxu0 0.0
  %777 = vmatpush1.msra.mxu0 0.0
  %778 = vmatprep.subr.mxu0 0.0
  %779 = vmatpush1.msra.mxu0 0.0
  %780 = vmatprep.subr.mxu0 0.0
  %781 = vmatpush1.msra.mxu0 0.0
  %782 = vmatprep.subr.mxu0 0.0
  %783 = vmatpush1.msra.mxu0 0.0
  %784 = vmatprep.subr.mxu0 0.0
  %785 = vmatpush1.msra.mxu0 0.0
  %786 = vmatprep.subr.mxu0 0.0
  %787 = vmatpush1.msra.mxu0 0.0
  %788 = vmatprep.subr.mxu0 0.0
  %789 = vmatpush1.msra.mxu0 0.0
  %790 = vmatprep.subr.mxu0 0.0
  %791 = vmatpush1.msra.mxu0 0.0
  %792 = vmatprep.subr.mxu0 0.0
  %793 = vmatpush1.msra.mxu0 0.0
  %794 = vmatprep.subr.mxu0 0.0
  %795 = vmatpush1.msra.mxu0 0.0
  %796 = vmatprep.subr.mxu0 0.0
  %797 = vmatpush1.msra.mxu0 0.0
  %798 = vmatprep.subr.mxu0 0.0
  %799 = vmatpush1.msra.mxu0 0.0
  %800 = vmatprep.subr.mxu0 0.0
  %801 = vmatpush1.msra.mxu0 0.0
  %802 = vmatprep.subr.mxu0 0.0
  %803 = vmatpush1.msra.mxu0 0.0
  %804 = vmatprep.subr.mxu0 0.0
  %805 = vmatpush1.msra.mxu0 0.0
  %806 = vmatprep.subr.mxu0 0.0
  %807 = vmatpush1.msra.mxu0 0.0
  %808 = vmatprep.subr.mxu0 0.0
  %809 = vmatpush1.msra.mxu0 0.0
  %810 = vmatprep.subr.mxu0 0.0
  %811 = vmatpush1.msra.mxu0 0.0
  %812 = vmatprep.subr.mxu0 0.0
  %813 = vmatpush1.msra.mxu0 0.0
  %814 = vmatprep.subr.mxu0 0.0
  %815 = vmatpush1.msra.mxu0 0.0
  %816 = vmatprep.subr.mxu0 0.0
  %817 = vmatpush1.msra.mxu0 0.0
  %818 = vmatprep.subr.mxu0 0.0
  %819 = vmatpush1.msra.mxu0 0.0
  %820 = vmatprep.subr.mxu0 0.0
  %821 = vmatpush1.msra.mxu0 0.0
  %822 = vmatprep.subr.mxu0 0.0
  %823 = vmatpush1.msra.mxu0 0.0
  %824 = vmatprep.subr.mxu0 0.0
  %825 = vmatpush1.msra.mxu0 0.0
  %826 = vmatprep.subr.mxu0 0.0
  %827 = vmatpush1.msra.mxu0 0.0
  %828 = vmatprep.subr.mxu0 0.0
  %829 = vmatpush1.msra.mxu0 0.0
  %830 = vmatprep.subr.mxu0 0.0
  %831 = vmatpush1.msra.mxu0 0.0
  %832 = vmatprep.subr.mxu0 0.0
  %833 = vmatpush1.msra.mxu0 0.0
  %834 = vmatprep.mubr.f32.mxu0 0.0
  %835 = vmatmul.mubr.f32.gmra.mrb[0].mxu0 %v685
  %v836 = vpop.f32.mrb[0].mxu0
  %v837 = vadd.f32 0.0, %v836
  %v838 = vpop.f32.mrb[0].mxu0
  %v839 = vadd.f32 0.0, %v838
  %840 = vdwg.mxu0
  %v841 = vadd.f32 %v636, %v766
  %v842 = vadd.f32 %v637, %v768
  %v843 = vadd.f32 %v638, %v837
  %v844 = vadd.f32 %v639, %v839
  %vm845 = vmand %vm648, %vm78
  %vm846 = vmand %vm649, %vm79
  %vm847 = vmand %vm650, %vm80
  %vm848 = vmand %vm651, %vm81
  %vm849 = vmand %vm845, %vm86
  %vm850 = vmand %vm846, %vm87
  %vm851 = vmand %vm847, %vm88
  %vm852 = vmand %vm848, %vm89
  %853 = vrot.lane.b32.xlu0 %v11, 111
  %v854 = vpop.permute.xlu0 %853
  %855 = vrot.lane.b32.xlu0 %v70, 111
  %v856 = vpop.permute.xlu0 %855
  %857 = vrot.lane.b32.xlu0 %v12, 111
  %v858 = vpop.permute.xlu0 %857
  %859 = vrot.lane.b32.xlu0 %v71, 111
  %v860 = vpop.permute.xlu0 %859
  %861 = vrot.lane.b32.xlu0 %v13, 111
  %v862 = vpop.permute.xlu0 %861
  %vm863 = vcmask 908288
  %v864 = vsel %vm863, %v854, %v856
  %v865 = vsel %vm863, %v856, %v858
  %v866 = vsel %vm863, %v858, %v860
  %v867 = vsel %vm863, %v860, %v862
  %v872 = vsel %vm849, %v864, 0.0
  %v873 = vsel %vm850, %v865, 0.0
  %v874 = vsel %vm851, %v866, 0.0
  %v875 = vsel %vm852, %v867, 0.0
  %876 = vrot.lane.b32.xlu0 %v14, 112
  %v877 = vpop.permute.xlu0 %876
  %v878 = vsel %vm121, %v877, 0
  %v881 = vsel %vm124, %v872, 0
  %v884 = vsel %vm124, %v873, 0
  %v887 = vsel %vm124, %v874, 0
  %v890 = vsel %vm124, %v875, 0
  %892 = vmatprep.subr.mxu0 %v884
  %893 = vmatpush1.msra.mxu0 %v881
  %894 = vmatprep.subr.mxu0 0.0
  %895 = vmatpush1.msra.mxu0 0.0
  %896 = vmatprep.subr.mxu0 0.0
  %897 = vmatpush1.msra.mxu0 0.0
  %898 = vmatprep.subr.mxu0 0.0
  %899 = vmatpush1.msra.mxu0 0.0
  %900 = vmatprep.subr.mxu0 0.0
  %901 = vmatpush1.msra.mxu0 0.0
  %902 = vmatprep.subr.mxu0 0.0
  %903 = vmatpush1.msra.mxu0 0.0
  %904 = vmatprep.subr.mxu0 0.0
  %905 = vmatpush1.msra.mxu0 0.0
  %906 = vmatprep.subr.mxu0 0.0
  %907 = vmatpush1.msra.mxu0 0.0
  %908 = vmatprep.subr.mxu0 0.0
  %909 = vmatpush1.msra.mxu0 0.0
  %910 = vmatprep.subr.mxu0 0.0
  %911 = vmatpush1.msra.mxu0 0.0
  %912 = vmatprep.subr.mxu0 0.0
  %913 = vmatpush1.msra.mxu0 0.0
  %914 = vmatprep.subr.mxu0 0.0
  %915 = vmatpush1.msra.mxu0 0.0
  %916 = vmatprep.subr.mxu0 0.0
  %917 = vmatpush1.msra.mxu0 0.0
  %918 = vmatprep.subr.mxu0 0.0
  %919 = vmatpush1.msra.mxu0 0.0
  %920 = vmatprep.subr.mxu0 0.0
  %921 = vmatpush1.msra.mxu0 0.0
  %922 = vmatprep.subr.mxu0 0.0
  %923 = vmatpush1.msra.mxu0 0.0
  %924 = vmatprep.subr.mxu0 0.0
  %925 = vmatpush1.msra.mxu0 0.0
  %926 = vmatprep.subr.mxu0 0.0
  %927 = vmatpush1.msra.mxu0 0.0
  %928 = vmatprep.subr.mxu0 0.0
  %929 = vmatpush1.msra.mxu0 0.0
  %930 = vmatprep.subr.mxu0 0.0
  %931 = vmatpush1.msra.mxu0 0.0
  %932 = vmatprep.subr.mxu0 0.0
  %933 = vmatpush1.msra.mxu0 0.0
  %934 = vmatprep.subr.mxu0 0.0
  %935 = vmatpush1.msra.mxu0 0.0
  %936 = vmatprep.subr.mxu0 0.0
  %937 = vmatpush1.msra.mxu0 0.0
  %938 = vmatprep.subr.mxu0 0.0
  %939 = vmatpush1.msra.mxu0 0.0
  %940 = vmatprep.subr.mxu0 0.0
  %941 = vmatpush1.msra.mxu0 0.0
  %942 = vmatprep.subr.mxu0 0.0
  %943 = vmatpush1.msra.mxu0 0.0
  %944 = vmatprep.subr.mxu0 0.0
  %945 = vmatpush1.msra.mxu0 0.0
  %946 = vmatprep.subr.mxu0 0.0
  %947 = vmatpush1.msra.mxu0 0.0
  %948 = vmatprep.subr.mxu0 0.0
  %949 = vmatpush1.msra.mxu0 0.0
  %950 = vmatprep.subr.mxu0 0.0
  %951 = vmatpush1.msra.mxu0 0.0
  %952 = vmatprep.subr.mxu0 0.0
  %953 = vmatpush1.msra.mxu0 0.0
  %954 = vmatprep.subr.mxu0 0.0
  %955 = vmatpush1.msra.mxu0 0.0
  %956 = vmatprep.mubr.f32.mxu0 0.0
  %957 = vmatmul.mubr.f32.gmra.mrb[0].mxu0 %v878
  %v958 = vpop.f32.mrb[0].mxu0
  %v959 = vadd.f32 0.0, %v958
  %v960 = vpop.f32.mrb[0].mxu0
  %v961 = vadd.f32 0.0, %v960
  %962 = vdwg.mxu0
  %963 = vmatprep.subr.mxu0 %v890
  %964 = vmatpush1.msra.mxu0 %v887
  %965 = vmatprep.subr.mxu0 0.0
  %966 = vmatpush1.msra.mxu0 0.0
  %967 = vmatprep.subr.mxu0 0.0
  %968 = vmatpush1.msra.mxu0 0.0
  %969 = vmatprep.subr.mxu0 0.0
  %970 = vmatpush1.msra.mxu0 0.0
  %971 = vmatprep.subr.mxu0 0.0
  %972 = vmatpush1.msra.mxu0 0.0
  %973 = vmatprep.subr.mxu0 0.0
  %974 = vmatpush1.msra.mxu0 0.0
  %975 = vmatprep.subr.mxu0 0.0
  %976 = vmatpush1.msra.mxu0 0.0
  %977 = vmatprep.subr.mxu0 0.0
  %978 = vmatpush1.msra.mxu0 0.0
  %979 = vmatprep.subr.mxu0 0.0
  %980 = vmatpush1.msra.mxu0 0.0
  %981 = vmatprep.subr.mxu0 0.0
  %982 = vmatpush1.msra.mxu0 0.0
  %983 = vmatprep.subr.mxu0 0.0
  %984 = vmatpush1.msra.mxu0 0.0
  %985 = vmatprep.subr.mxu0 0.0
  %986 = vmatpush1.msra.mxu0 0.0
  %987 = vmatprep.subr.mxu0 0.0
  %988 = vmatpush1.msra.mxu0 0.0
  %989 = vmatprep.subr.mxu0 0.0
  %990 = vmatpush1.msra.mxu0 0.0
  %991 = vmatprep.subr.mxu0 0.0
  %992 = vmatpush1.msra.mxu0 0.0
  %993 = vmatprep.subr.mxu0 0.0
  %994 = vmatpush1.msra.mxu0 0.0
  %995 = vmatprep.subr.mxu0 0.0
  %996 = vmatpush1.msra.mxu0 0.0
  %997 = vmatprep.subr.mxu0 0.0
  %998 = vmatpush1.msra.mxu0 0.0
  %999 = vmatprep.subr.mxu0 0.0
  %1000 = vmatpush1.msra.mxu0 0.0
  %1001 = vmatprep.subr.mxu0 0.0
  %1002 = vmatpush1.msra.mxu0 0.0
  %1003 = vmatprep.subr.mxu0 0.0
  %1004 = vmatpush1.msra.mxu0 0.0
  %1005 = vmatprep.subr.mxu0 0.0
  %1006 = vmatpush1.msra.mxu0 0.0
  %1007 = vmatprep.subr.mxu0 0.0
  %1008 = vmatpush1.msra.mxu0 0.0
  %1009 = vmatprep.subr.mxu0 0.0
  %1010 = vmatpush1.msra.mxu0 0.0
  %1011 = vmatprep.subr.mxu0 0.0
  %1012 = vmatpush1.msra.mxu0 0.0
  %1013 = vmatprep.subr.mxu0 0.0
  %1014 = vmatpush1.msra.mxu0 0.0
  %1015 = vmatprep.subr.mxu0 0.0
  %1016 = vmatpush1.msra.mxu0 0.0
  %1017 = vmatprep.subr.mxu0 0.0
  %1018 = vmatpush1.msra.mxu0 0.0
  %1019 = vmatprep.subr.mxu0 0.0
  %1020 = vmatpush1.msra.mxu0 0.0
  %1021 = vmatprep.subr.mxu0 0.0
  %1022 = vmatpush1.msra.mxu0 0.0
  %1023 = vmatprep.subr.mxu0 0.0
  %1024 = vmatpush1.msra.mxu0 0.0
  %1025 = vmatprep.subr.mxu0 0.0
  %1026 = vmatpush1.msra.mxu0 0.0
  %1027 = vmatprep.mubr.f32.mxu0 0.0
  %1028 = vmatmul.mubr.f32.gmra.mrb[0].mxu0 %v878
  %v1029 = vpop.f32.mrb[0].mxu0
  %v1030 = vadd.f32 0.0, %v1029
  %v1031 = vpop.f32.mrb[0].mxu0
  %v1032 = vadd.f32 0.0, %v1031
  %1033 = vdwg.mxu0
  %v1034 = vadd.f32 %v841, %v959
  %v1035 = vadd.f32 %v842, %v961
  %v1036 = vadd.f32 %v843, %v1030
  %v1037 = vadd.f32 %v844, %v1032
  %vm1038 = vmand %vm648, %vm439
  %vm1039 = vmand %vm649, %vm440
  %vm1040 = vmand %vm650, %vm441
  %vm1041 = vmand %vm651, %vm442
  %vm1042 = vmand %vm1038, %vm447
  %vm1043 = vmand %vm1039, %vm448
  %vm1044 = vmand %vm1040, %vm449
  %vm1045 = vmand %vm1041, %vm450
  %1046 = vrot.lane.b32.xlu0 %v11, 110
  %v1047 = vpop.permute.xlu0 %1046
  %1048 = vrot.lane.b32.xlu0 %v70, 110
  %v1049 = vpop.permute.xlu0 %1048
  %1050 = vrot.lane.b32.xlu0 %v12, 110
  %v1051 = vpop.permute.xlu0 %1050
  %1052 = vrot.lane.b32.xlu0 %v71, 110
  %v1053 = vpop.permute.xlu0 %1052
  %1054 = vrot.lane.b32.xlu0 %v13, 110
  %v1055 = vpop.permute.xlu0 %1054
  %vm1056 = vcmask 900096
  %v1057 = vsel %vm1056, %v1047, %v1049
  %v1058 = vsel %vm1056, %v1049, %v1051
  %v1059 = vsel %vm1056, %v1051, %v1053
  %v1060 = vsel %vm1056, %v1053, %v1055
  %v1065 = vsel %vm1042, %v1057, 0.0
  %v1066 = vsel %vm1043, %v1058, 0.0
  %v1067 = vsel %vm1044, %v1059, 0.0
  %v1068 = vsel %vm1045, %v1060, 0.0
  %1069 = vrot.lane.b32.xlu0 %v14, 108
  %v1070 = vpop.permute.xlu0 %1069
  %v1071 = vsel %vm121, %v1070, 0
  %v1074 = vsel %vm124, %v1065, 0
  %v1077 = vsel %vm124, %v1066, 0
  %v1080 = vsel %vm124, %v1067, 0
  %v1083 = vsel %vm124, %v1068, 0
  %1085 = vmatprep.subr.mxu0 %v1077
  %1086 = vmatpush1.msra.mxu0 %v1074
  %1087 = vmatprep.subr.mxu0 0.0
  %1088 = vmatpush1.msra.mxu0 0.0
  %1089 = vmatprep.subr.mxu0 0.0
  %1090 = vmatpush1.msra.mxu0 0.0
  %1091 = vmatprep.subr.mxu0 0.0
  %1092 = vmatpush1.msra.mxu0 0.0
  %1093 = vmatprep.subr.mxu0 0.0
  %1094 = vmatpush1.msra.mxu0 0.0
  %1095 = vmatprep.subr.mxu0 0.0
  %1096 = vmatpush1.msra.mxu0 0.0
  %1097 = vmatprep.subr.mxu0 0.0
  %1098 = vmatpush1.msra.mxu0 0.0
  %1099 = vmatprep.subr.mxu0 0.0
  %1100 = vmatpush1.msra.mxu0 0.0
  %1101 = vmatprep.subr.mxu0 0.0
  %1102 = vmatpush1.msra.mxu0 0.0
  %1103 = vmatprep.subr.mxu0 0.0
  %1104 = vmatpush1.msra.mxu0 0.0
  %1105 = vmatprep.subr.mxu0 0.0
  %1106 = vmatpush1.msra.mxu0 0.0
  %1107 = vmatprep.subr.mxu0 0.0
  %1108 = vmatpush1.msra.mxu0 0.0
  %1109 = vmatprep.subr.mxu0 0.0
  %1110 = vmatpush1.msra.mxu0 0.0
  %1111 = vmatprep.subr.mxu0 0.0
  %1112 = vmatpush1.msra.mxu0 0.0
  %1113 = vmatprep.subr.mxu0 0.0
  %1114 = vmatpush1.msra.mxu0 0.0
  %1115 = vmatprep.subr.mxu0 0.0
  %1116 = vmatpush1.msra.mxu0 0.0
  %1117 = vmatprep.subr.mxu0 0.0
  %1118 = vmatpush1.msra.mxu0 0.0
  %1119 = vmatprep.subr.mxu0 0.0
  %1120 = vmatpush1.msra.mxu0 0.0
  %1121 = vmatprep.subr.mxu0 0.0
  %1122 = vmatpush1.msra.mxu0 0.0
  %1123 = vmatprep.subr.mxu0 0.0
  %1124 = vmatpush1.msra.mxu0 0.0
  %1125 = vmatprep.subr.mxu0 0.0
  %1126 = vmatpush1.msra.mxu0 0.0
  %1127 = vmatprep.subr.mxu0 0.0
  %1128 = vmatpush1.msra.mxu0 0.0
  %1129 = vmatprep.subr.mxu0 0.0
  %1130 = vmatpush1.msra.mxu0 0.0
  %1131 = vmatprep.subr.mxu0 0.0
  %1132 = vmatpush1.msra.mxu0 0.0
  %1133 = vmatprep.subr.mxu0 0.0
  %1134 = vmatpush1.msra.mxu0 0.0
  %1135 = vmatprep.subr.mxu0 0.0
  %1136 = vmatpush1.msra.mxu0 0.0
  %1137 = vmatprep.subr.mxu0 0.0
  %1138 = vmatpush1.msra.mxu0 0.0
  %1139 = vmatprep.subr.mxu0 0.0
  %1140 = vmatpush1.msra.mxu0 0.0
  %1141 = vmatprep.subr.mxu0 0.0
  %1142 = vmatpush1.msra.mxu0 0.0
  %1143 = vmatprep.subr.mxu0 0.0
  %1144 = vmatpush1.msra.mxu0 0.0
  %1145 = vmatprep.subr.mxu0 0.0
  %1146 = vmatpush1.msra.mxu0 0.0
  %1147 = vmatprep.subr.mxu0 0.0
  %1148 = vmatpush1.msra.mxu0 0.0
  %1149 = vmatprep.mubr.f32.mxu0 0.0
  %1150 = vmatmul.mubr.f32.gmra.mrb[0].mxu0 %v1071
  %v1151 = vpop.f32.mrb[0].mxu0
  %v1152 = vadd.f32 0.0, %v1151
  %v1153 = vpop.f32.mrb[0].mxu0
  %v1154 = vadd.f32 0.0, %v1153
  %1155 = vdwg.mxu0
  %1156 = vmatprep.subr.mxu0 %v1083
  %1157 = vmatpush1.msra.mxu0 %v1080
  %1158 = vmatprep.subr.mxu0 0.0
  %1159 = vmatpush1.msra.mxu0 0.0
  %1160 = vmatprep.subr.mxu0 0.0
  %1161 = vmatpush1.msra.mxu0 0.0
  %1162 = vmatprep.subr.mxu0 0.0
  %1163 = vmatpush1.msra.mxu0 0.0
  %1164 = vmatprep.subr.mxu0 0.0
  %1165 = vmatpush1.msra.mxu0 0.0
  %1166 = vmatprep.subr.mxu0 0.0
  %1167 = vmatpush1.msra.mxu0 0.0
  %1168 = vmatprep.subr.mxu0 0.0
  %1169 = vmatpush1.msra.mxu0 0.0
  %1170 = vmatprep.subr.mxu0 0.0
  %1171 = vmatpush1.msra.mxu0 0.0
  %1172 = vmatprep.subr.mxu0 0.0
  %1173 = vmatpush1.msra.mxu0 0.0
  %1174 = vmatprep.subr.mxu0 0.0
  %1175 = vmatpush1.msra.mxu0 0.0
  %1176 = vmatprep.subr.mxu0 0.0
  %1177 = vmatpush1.msra.mxu0 0.0
  %1178 = vmatprep.subr.mxu0 0.0
  %1179 = vmatpush1.msra.mxu0 0.0
  %1180 = vmatprep.subr.mxu0 0.0
  %1181 = vmatpush1.msra.mxu0 0.0
  %1182 = vmatprep.subr.mxu0 0.0
  %1183 = vmatpush1.msra.mxu0 0.0
  %1184 = vmatprep.subr.mxu0 0.0
  %1185 = vmatpush1.msra.mxu0 0.0
  %1186 = vmatprep.subr.mxu0 0.0
  %1187 = vmatpush1.msra.mxu0 0.0
  %1188 = vmatprep.subr.mxu0 0.0
  %1189 = vmatpush1.msra.mxu0 0.0
  %1190 = vmatprep.subr.mxu0 0.0
  %1191 = vmatpush1.msra.mxu0 0.0
  %1192 = vmatprep.subr.mxu0 0.0
  %1193 = vmatpush1.msra.mxu0 0.0
  %1194 = vmatprep.subr.mxu0 0.0
  %1195 = vmatpush1.msra.mxu0 0.0
  %1196 = vmatprep.subr.mxu0 0.0
  %1197 = vmatpush1.msra.mxu0 0.0
  %1198 = vmatprep.subr.mxu0 0.0
  %1199 = vmatpush1.msra.mxu0 0.0
  %1200 = vmatprep.subr.mxu0 0.0
  %1201 = vmatpush1.msra.mxu0 0.0
  %1202 = vmatprep.subr.mxu0 0.0
  %1203 = vmatpush1.msra.mxu0 0.0
  %1204 = vmatprep.subr.mxu0 0.0
  %1205 = vmatpush1.msra.mxu0 0.0
  %1206 = vmatprep.subr.mxu0 0.0
  %1207 = vmatpush1.msra.mxu0 0.0
  %1208 = vmatprep.subr.mxu0 0.0
  %1209 = vmatpush1.msra.mxu0 0.0
  %1210 = vmatprep.subr.mxu0 0.0
  %1211 = vmatpush1.msra.mxu0 0.0
  %1212 = vmatprep.subr.mxu0 0.0
  %1213 = vmatpush1.msra.mxu0 0.0
  %1214 = vmatprep.subr.mxu0 0.0
  %1215 = vmatpush1.msra.mxu0 0.0
  %1216 = vmatprep.subr.mxu0 0.0
  %1217 = vmatpush1.msra.mxu0 0.0
  %1218 = vmatprep.subr.mxu0 0.0
  %1219 = vmatpush1.msra.mxu0 0.0
  %1220 = vmatprep.mubr.f32.mxu0 0.0
  %1221 = vmatmul.mubr.f32.gmra.mrb[0].mxu0 %v1071
  %v1222 = vpop.f32.mrb[0].mxu0
  %v1223 = vadd.f32 0.0, %v1222
  %v1224 = vpop.f32.mrb[0].mxu0
  %v1225 = vadd.f32 0.0, %v1224
  %1226 = vdwg.mxu0
  %v1227 = vadd.f32 %v1034, %v1152
  %v1228 = vadd.f32 %v1035, %v1154
  %v1229 = vadd.f32 %v1036, %v1223
  %v1230 = vadd.f32 %v1037, %v1225
  %v1231 = vadd.s32 %v24, 1
  %v1232 = vadd.s32 %v25, 1
  %v1233 = vadd.s32 %v26, 1
  %v1234 = vadd.s32 %v27, 1
  %vm1235 = vcmp.ge.s32.totalorder %v1231, 0
  %vm1236 = vcmp.ge.s32.totalorder %v1232, 0
  %vm1237 = vcmp.ge.s32.totalorder %v1233, 0
  %vm1238 = vcmp.ge.s32.totalorder %v1234, 0
  %vm1239 = vcmp.lt.s32.totalorder %v1231, 16
  %vm1240 = vcmp.lt.s32.totalorder %v1232, 16
  %vm1241 = vcmp.lt.s32.totalorder %v1233, 16
  %vm1242 = vcmp.lt.s32.totalorder %v1234, 16
  %vm1243 = vmand %vm1235, %vm1239
  %vm1244 = vmand %vm1236, %vm1240
  %vm1245 = vmand %vm1237, %vm1241
  %vm1246 = vmand %vm1238, %vm1242
  %vm1247 = vmand %vm1243, %vm52
  %vm1248 = vmand %vm1244, %vm53
  %vm1249 = vmand %vm1245, %vm54
  %vm1250 = vmand %vm1246, %vm55
  %vm1251 = vmand %vm1247, %vm60
  %vm1252 = vmand %vm1248, %vm61
  %vm1253 = vmand %vm1249, %vm62
  %vm1254 = vmand %vm1250, %vm63
  %1255 = vrot.lane.b32.xlu0 %v11, 96
  %v1256 = vpop.permute.xlu0 %1255
  %1257 = vrot.lane.b32.xlu0 %v70, 96
  %v1258 = vpop.permute.xlu0 %1257
  %1259 = vrot.lane.b32.xlu0 %v12, 96
  %v1260 = vpop.permute.xlu0 %1259
  %1261 = vrot.lane.b32.xlu0 %v71, 96
  %v1262 = vpop.permute.xlu0 %1261
  %1263 = vrot.lane.b32.xlu0 %v13, 96
  %v1264 = vpop.permute.xlu0 %1263
  %vm1265 = vcmask 785408
  %v1266 = vsel %vm1265, %v1256, %v1258
  %v1267 = vsel %vm1265, %v1258, %v1260
  %v1268 = vsel %vm1265, %v1260, %v1262
  %v1269 = vsel %vm1265, %v1262, %v1264
  %v1274 = vsel %vm1251, %v1266, 0.0
  %v1275 = vsel %vm1252, %v1267, 0.0
  %v1276 = vsel %vm1253, %v1268, 0.0
  %v1277 = vsel %vm1254, %v1269, 0.0
  %1278 = vrot.lane.b32.xlu0 %v14, 104
  %v1279 = vpop.permute.xlu0 %1278
  %v1280 = vsel %vm121, %v1279, 0
  %v1283 = vsel %vm124, %v1274, 0
  %v1286 = vsel %vm124, %v1275, 0
  %v1289 = vsel %vm124, %v1276, 0
  %v1292 = vsel %vm124, %v1277, 0
  %1294 = vmatprep.subr.mxu0 %v1286
  %1295 = vmatpush1.msra.mxu0 %v1283
  %1296 = vmatprep.subr.mxu0 0.0
  %1297 = vmatpush1.msra.mxu0 0.0
  %1298 = vmatprep.subr.mxu0 0.0
  %1299 = vmatpush1.msra.mxu0 0.0
  %1300 = vmatprep.subr.mxu0 0.0
  %1301 = vmatpush1.msra.mxu0 0.0
  %1302 = vmatprep.subr.mxu0 0.0
  %1303 = vmatpush1.msra.mxu0 0.0
  %1304 = vmatprep.subr.mxu0 0.0
  %1305 = vmatpush1.msra.mxu0 0.0
  %1306 = vmatprep.subr.mxu0 0.0
  %1307 = vmatpush1.msra.mxu0 0.0
  %1308 = vmatprep.subr.mxu0 0.0
  %1309 = vmatpush1.msra.mxu0 0.0
  %1310 = vmatprep.subr.mxu0 0.0
  %1311 = vmatpush1.msra.mxu0 0.0
  %1312 = vmatprep.subr.mxu0 0.0
  %1313 = vmatpush1.msra.mxu0 0.0
  %1314 = vmatprep.subr.mxu0 0.0
  %1315 = vmatpush1.msra.mxu0 0.0
  %1316 = vmatprep.subr.mxu0 0.0
  %1317 = vmatpush1.msra.mxu0 0.0
  %1318 = vmatprep.subr.mxu0 0.0
  %1319 = vmatpush1.msra.mxu0 0.0
  %1320 = vmatprep.subr.mxu0 0.0
  %1321 = vmatpush1.msra.mxu0 0.0
  %1322 = vmatprep.subr.mxu0 0.0
  %1323 = vmatpush1.msra.mxu0 0.0
  %1324 = vmatprep.subr.mxu0 0.0
  %1325 = vmatpush1.msra.mxu0 0.0
  %1326 = vmatprep.subr.mxu0 0.0
  %1327 = vmatpush1.msra.mxu0 0.0
  %1328 = vmatprep.subr.mxu0 0.0
  %1329 = vmatpush1.msra.mxu0 0.0
  %1330 = vmatprep.subr.mxu0 0.0
  %1331 = vmatpush1.msra.mxu0 0.0
  %1332 = vmatprep.subr.mxu0 0.0
  %1333 = vmatpush1.msra.mxu0 0.0
  %1334 = vmatprep.subr.mxu0 0.0
  %1335 = vmatpush1.msra.mxu0 0.0
  %1336 = vmatprep.subr.mxu0 0.0
  %1337 = vmatpush1.msra.mxu0 0.0
  %1338 = vmatprep.subr.mxu0 0.0
  %1339 = vmatpush1.msra.mxu0 0.0
  %1340 = vmatprep.subr.mxu0 0.0
  %1341 = vmatpush1.msra.mxu0 0.0
  %1342 = vmatprep.subr.mxu0 0.0
  %1343 = vmatpush1.msra.mxu0 0.0
  %1344 = vmatprep.subr.mxu0 0.0
  %1345 = vmatpush1.msra.mxu0 0.0
  %1346 = vmatprep.subr.mxu0 0.0
  %1347 = vmatpush1.msra.mxu0 0.0
  %1348 = vmatprep.subr.mxu0 0.0
  %1349 = vmatpush1.msra.mxu0 0.0
  %1350 = vmatprep.subr.mxu0 0.0
  %1351 = vmatpush1.msra.mxu0 0.0
  %1352 = vmatprep.subr.mxu0 0.0
  %1353 = vmatpush1.msra.mxu0 0.0
  %1354 = vmatprep.subr.mxu0 0.0
  %1355 = vmatpush1.msra.mxu0 0.0
  %1356 = vmatprep.subr.mxu0 0.0
  %1357 = vmatpush1.msra.mxu0 0.0
  %1358 = vmatprep.mubr.f32.mxu0 0.0
  %1359 = vmatmul.mubr.f32.gmra.mrb[0].mxu0 %v1280
  %v1360 = vpop.f32.mrb[0].mxu0
  %v1361 = vadd.f32 0.0, %v1360
  %v1362 = vpop.f32.mrb[0].mxu0
  %v1363 = vadd.f32 0.0, %v1362
  %1364 = vdwg.mxu0
  %1365 = vmatprep.subr.mxu0 %v1292
  %1366 = vmatpush1.msra.mxu0 %v1289
  %1367 = vmatprep.subr.mxu0 0.0
  %1368 = vmatpush1.msra.mxu0 0.0
  %1369 = vmatprep.subr.mxu0 0.0
  %1370 = vmatpush1.msra.mxu0 0.0
  %1371 = vmatprep.subr.mxu0 0.0
  %1372 = vmatpush1.msra.mxu0 0.0
  %1373 = vmatprep.subr.mxu0 0.0
  %1374 = vmatpush1.msra.mxu0 0.0
  %1375 = vmatprep.subr.mxu0 0.0
  %1376 = vmatpush1.msra.mxu0 0.0
  %1377 = vmatprep.subr.mxu0 0.0
  %1378 = vmatpush1.msra.mxu0 0.0
  %1379 = vmatprep.subr.mxu0 0.0
  %1380 = vmatpush1.msra.mxu0 0.0
  %1381 = vmatprep.subr.mxu0 0.0
  %1382 = vmatpush1.msra.mxu0 0.0
  %1383 = vmatprep.subr.mxu0 0.0
  %1384 = vmatpush1.msra.mxu0 0.0
  %1385 = vmatprep.subr.mxu0 0.0
  %1386 = vmatpush1.msra.mxu0 0.0
  %1387 = vmatprep.subr.mxu0 0.0
  %1388 = vmatpush1.msra.mxu0 0.0
  %1389 = vmatprep.subr.mxu0 0.0
  %1390 = vmatpush1.msra.mxu0 0.0
  %1391 = vmatprep.subr.mxu0 0.0
  %1392 = vmatpush1.msra.mxu0 0.0
  %1393 = vmatprep.subr.mxu0 0.0
  %1394 = vmatpush1.msra.mxu0 0.0
  %1395 = vmatprep.subr.mxu0 0.0
  %1396 = vmatpush1.msra.mxu0 0.0
  %1397 = vmatprep.subr.mxu0 0.0
  %1398 = vmatpush1.msra.mxu0 0.0
  %1399 = vmatprep.subr.mxu0 0.0
  %1400 = vmatpush1.msra.mxu0 0.0
  %1401 = vmatprep.subr.mxu0 0.0
  %1402 = vmatpush1.msra.mxu0 0.0
  %1403 = vmatprep.subr.mxu0 0.0
  %1404 = vmatpush1.msra.mxu0 0.0
  %1405 = vmatprep.subr.mxu0 0.0
  %1406 = vmatpush1.msra.mxu0 0.0
  %1407 = vmatprep.subr.mxu0 0.0
  %1408 = vmatpush1.msra.mxu0 0.0
  %1409 = vmatprep.subr.mxu0 0.0
  %1410 = vmatpush1.msra.mxu0 0.0
  %1411 = vmatprep.subr.mxu0 0.0
  %1412 = vmatpush1.msra.mxu0 0.0
  %1413 = vmatprep.subr.mxu0 0.0
  %1414 = vmatpush1.msra.mxu0 0.0
  %1415 = vmatprep.subr.mxu0 0.0
  %1416 = vmatpush1.msra.mxu0 0.0
  %1417 = vmatprep.subr.mxu0 0.0
  %1418 = vmatpush1.msra.mxu0 0.0
  %1419 = vmatprep.subr.mxu0 0.0
  %1420 = vmatpush1.msra.mxu0 0.0
  %1421 = vmatprep.subr.mxu0 0.0
  %1422 = vmatpush1.msra.mxu0 0.0
  %1423 = vmatprep.subr.mxu0 0.0
  %1424 = vmatpush1.msra.mxu0 0.0
  %1425 = vmatprep.subr.mxu0 0.0
  %1426 = vmatpush1.msra.mxu0 0.0
  %1427 = vmatprep.subr.mxu0 0.0
  %1428 = vmatpush1.msra.mxu0 0.0
  %1429 = vmatprep.mubr.f32.mxu0 0.0
  %1430 = vmatmul.mubr.f32.gmra.mrb[0].mxu0 %v1280
  %v1431 = vpop.f32.mrb[0].mxu0
  %v1432 = vadd.f32 0.0, %v1431
  %v1433 = vpop.f32.mrb[0].mxu0
  %v1434 = vadd.f32 0.0, %v1433
  %1435 = vdwg.mxu0
  %v1436 = vadd.f32 %v1227, %v1361
  %v1437 = vadd.f32 %v1228, %v1363
  %v1438 = vadd.f32 %v1229, %v1432
  %v1439 = vadd.f32 %v1230, %v1434
  %vm1440 = vmand %vm1243, %vm78
  %vm1441 = vmand %vm1244, %vm79
  %vm1442 = vmand %vm1245, %vm80
  %vm1443 = vmand %vm1246, %vm81
  %vm1444 = vmand %vm1440, %vm86
  %vm1445 = vmand %vm1441, %vm87
  %vm1446 = vmand %vm1442, %vm88
  %vm1447 = vmand %vm1443, %vm89
  %1448 = vrot.lane.b32.xlu0 %v11, 95
  %v1449 = vpop.permute.xlu0 %1448
  %1450 = vrot.lane.b32.xlu0 %v70, 95
  %v1451 = vpop.permute.xlu0 %1450
  %1452 = vrot.lane.b32.xlu0 %v12, 95
  %v1453 = vpop.permute.xlu0 %1452
  %1454 = vrot.lane.b32.xlu0 %v71, 95
  %v1455 = vpop.permute.xlu0 %1454
  %1456 = vrot.lane.b32.xlu0 %v13, 95
  %v1457 = vpop.permute.xlu0 %1456
  %vm1458 = vcmask 777216
  %v1459 = vsel %vm1458, %v1449, %v1451
  %v1460 = vsel %vm1458, %v1451, %v1453
  %v1461 = vsel %vm1458, %v1453, %v1455
  %v1462 = vsel %vm1458, %v1455, %v1457
  %v1467 = vsel %vm1444, %v1459, 0.0
  %v1468 = vsel %vm1445, %v1460, 0.0
  %v1469 = vsel %vm1446, %v1461, 0.0
  %v1470 = vsel %vm1447, %v1462, 0.0
  %1471 = vrot.lane.b32.xlu0 %v14, 100
  %v1472 = vpop.permute.xlu0 %1471
  %v1473 = vsel %vm121, %v1472, 0
  %v1476 = vsel %vm124, %v1467, 0
  %v1479 = vsel %vm124, %v1468, 0
  %v1482 = vsel %vm124, %v1469, 0
  %v1485 = vsel %vm124, %v1470, 0
  %1487 = vmatprep.subr.mxu0 %v1479
  %1488 = vmatpush1.msra.mxu0 %v1476
  %1489 = vmatprep.subr.mxu0 0.0
  %1490 = vmatpush1.msra.mxu0 0.0
  %1491 = vmatprep.subr.mxu0 0.0
  %1492 = vmatpush1.msra.mxu0 0.0
  %1493 = vmatprep.subr.mxu0 0.0
  %1494 = vmatpush1.msra.mxu0 0.0
  %1495 = vmatprep.subr.mxu0 0.0
  %1496 = vmatpush1.msra.mxu0 0.0
  %1497 = vmatprep.subr.mxu0 0.0
  %1498 = vmatpush1.msra.mxu0 0.0
  %1499 = vmatprep.subr.mxu0 0.0
  %1500 = vmatpush1.msra.mxu0 0.0
  %1501 = vmatprep.subr.mxu0 0.0
  %1502 = vmatpush1.msra.mxu0 0.0
  %1503 = vmatprep.subr.mxu0 0.0
  %1504 = vmatpush1.msra.mxu0 0.0
  %1505 = vmatprep.subr.mxu0 0.0
  %1506 = vmatpush1.msra.mxu0 0.0
  %1507 = vmatprep.subr.mxu0 0.0
  %1508 = vmatpush1.msra.mxu0 0.0
  %1509 = vmatprep.subr.mxu0 0.0
  %1510 = vmatpush1.msra.mxu0 0.0
  %1511 = vmatprep.subr.mxu0 0.0
  %1512 = vmatpush1.msra.mxu0 0.0
  %1513 = vmatprep.subr.mxu0 0.0
  %1514 = vmatpush1.msra.mxu0 0.0
  %1515 = vmatprep.subr.mxu0 0.0
  %1516 = vmatpush1.msra.mxu0 0.0
  %1517 = vmatprep.subr.mxu0 0.0
  %1518 = vmatpush1.msra.mxu0 0.0
  %1519 = vmatprep.subr.mxu0 0.0
  %1520 = vmatpush1.msra.mxu0 0.0
  %1521 = vmatprep.subr.mxu0 0.0
  %1522 = vmatpush1.msra.mxu0 0.0
  %1523 = vmatprep.subr.mxu0 0.0
  %1524 = vmatpush1.msra.mxu0 0.0
  %1525 = vmatprep.subr.mxu0 0.0
  %1526 = vmatpush1.msra.mxu0 0.0
  %1527 = vmatprep.subr.mxu0 0.0
  %1528 = vmatpush1.msra.mxu0 0.0
  %1529 = vmatprep.subr.mxu0 0.0
  %1530 = vmatpush1.msra.mxu0 0.0
  %1531 = vmatprep.subr.mxu0 0.0
  %1532 = vmatpush1.msra.mxu0 0.0
  %1533 = vmatprep.subr.mxu0 0.0
  %1534 = vmatpush1.msra.mxu0 0.0
  %1535 = vmatprep.subr.mxu0 0.0
  %1536 = vmatpush1.msra.mxu0 0.0
  %1537 = vmatprep.subr.mxu0 0.0
  %1538 = vmatpush1.msra.mxu0 0.0
  %1539 = vmatprep.subr.mxu0 0.0
  %1540 = vmatpush1.msra.mxu0 0.0
  %1541 = vmatprep.subr.mxu0 0.0
  %1542 = vmatpush1.msra.mxu0 0.0
  %1543 = vmatprep.subr.mxu0 0.0
  %1544 = vmatpush1.msra.mxu0 0.0
  %1545 = vmatprep.subr.mxu0 0.0
  %1546 = vmatpush1.msra.mxu0 0.0
  %1547 = vmatprep.subr.mxu0 0.0
  %1548 = vmatpush1.msra.mxu0 0.0
  %1549 = vmatprep.subr.mxu0 0.0
  %1550 = vmatpush1.msra.mxu0 0.0
  %1551 = vmatprep.mubr.f32.mxu0 0.0
  %1552 = vmatmul.mubr.f32.gmra.mrb[0].mxu0 %v1473
  %v1553 = vpop.f32.mrb[0].mxu0
  %v1554 = vadd.f32 0.0, %v1553
  %v1555 = vpop.f32.mrb[0].mxu0
  %v1556 = vadd.f32 0.0, %v1555
  %1557 = vdwg.mxu0
  %1558 = vmatprep.subr.mxu0 %v1485
  %1559 = vmatpush1.msra.mxu0 %v1482
  %1560 = vmatprep.subr.mxu0 0.0
  %1561 = vmatpush1.msra.mxu0 0.0
  %1562 = vmatprep.subr.mxu0 0.0
  %1563 = vmatpush1.msra.mxu0 0.0
  %1564 = vmatprep.subr.mxu0 0.0
  %1565 = vmatpush1.msra.mxu0 0.0
  %1566 = vmatprep.subr.mxu0 0.0
  %1567 = vmatpush1.msra.mxu0 0.0
  %1568 = vmatprep.subr.mxu0 0.0
  %1569 = vmatpush1.msra.mxu0 0.0
  %1570 = vmatprep.subr.mxu0 0.0
  %1571 = vmatpush1.msra.mxu0 0.0
  %1572 = vmatprep.subr.mxu0 0.0
  %1573 = vmatpush1.msra.mxu0 0.0
  %1574 = vmatprep.subr.mxu0 0.0
  %1575 = vmatpush1.msra.mxu0 0.0
  %1576 = vmatprep.subr.mxu0 0.0
  %1577 = vmatpush1.msra.mxu0 0.0
  %1578 = vmatprep.subr.mxu0 0.0
  %1579 = vmatpush1.msra.mxu0 0.0
  %1580 = vmatprep.subr.mxu0 0.0
  %1581 = vmatpush1.msra.mxu0 0.0
  %1582 = vmatprep.subr.mxu0 0.0
  %1583 = vmatpush1.msra.mxu0 0.0
  %1584 = vmatprep.subr.mxu0 0.0
  %1585 = vmatpush1.msra.mxu0 0.0
  %1586 = vmatprep.subr.mxu0 0.0
  %1587 = vmatpush1.msra.mxu0 0.0
  %1588 = vmatprep.subr.mxu0 0.0
  %1589 = vmatpush1.msra.mxu0 0.0
  %1590 = vmatprep.subr.mxu0 0.0
  %1591 = vmatpush1.msra.mxu0 0.0
  %1592 = vmatprep.subr.mxu0 0.0
  %1593 = vmatpush1.msra.mxu0 0.0
  %1594 = vmatprep.subr.mxu0 0.0
  %1595 = vmatpush1.msra.mxu0 0.0
  %1596 = vmatprep.subr.mxu0 0.0
  %1597 = vmatpush1.msra.mxu0 0.0
  %1598 = vmatprep.subr.mxu0 0.0
  %1599 = vmatpush1.msra.mxu0 0.0
  %1600 = vmatprep.subr.mxu0 0.0
  %1601 = vmatpush1.msra.mxu0 0.0
  %1602 = vmatprep.subr.mxu0 0.0
  %1603 = vmatpush1.msra.mxu0 0.0
  %1604 = vmatprep.subr.mxu0 0.0
  %1605 = vmatpush1.msra.mxu0 0.0
  %1606 = vmatprep.subr.mxu0 0.0
  %1607 = vmatpush1.msra.mxu0 0.0
  %1608 = vmatprep.subr.mxu0 0.0
  %1609 = vmatpush1.msra.mxu0 0.0
  %1610 = vmatprep.subr.mxu0 0.0
  %1611 = vmatpush1.msra.mxu0 0.0
  %1612 = vmatprep.subr.mxu0 0.0
  %1613 = vmatpush1.msra.mxu0 0.0
  %1614 = vmatprep.subr.mxu0 0.0
  %1615 = vmatpush1.msra.mxu0 0.0
  %1616 = vmatprep.subr.mxu0 0.0
  %1617 = vmatpush1.msra.mxu0 0.0
  %1618 = vmatprep.subr.mxu0 0.0
  %1619 = vmatpush1.msra.mxu0 0.0
  %1620 = vmatprep.subr.mxu0 0.0
  %1621 = vmatpush1.msra.mxu0 0.0
  %1622 = vmatprep.mubr.f32.mxu0 0.0
  %1623 = vmatmul.mubr.f32.gmra.mrb[0].mxu0 %v1473
  %v1624 = vpop.f32.mrb[0].mxu0
  %v1625 = vadd.f32 0.0, %v1624
  %v1626 = vpop.f32.mrb[0].mxu0
  %v1627 = vadd.f32 0.0, %v1626
  %1628 = vdwg.mxu0
  %v1629 = vadd.f32 %v1436, %v1554
  %v1630 = vadd.f32 %v1437, %v1556
  %v1631 = vadd.f32 %v1438, %v1625
  %v1632 = vadd.f32 %v1439, %v1627
  %vm1633 = vmand %vm1243, %vm439
  %vm1634 = vmand %vm1244, %vm440
  %vm1635 = vmand %vm1245, %vm441
  %vm1636 = vmand %vm1246, %vm442
  %vm1637 = vmand %vm1633, %vm447
  %vm1638 = vmand %vm1634, %vm448
  %vm1639 = vmand %vm1635, %vm449
  %vm1640 = vmand %vm1636, %vm450
  %1641 = vrot.lane.b32.xlu0 %v11, 94
  %v1642 = vpop.permute.xlu0 %1641
  %1643 = vrot.lane.b32.xlu0 %v70, 94
  %v1644 = vpop.permute.xlu0 %1643
  %1645 = vrot.lane.b32.xlu0 %v12, 94
  %v1646 = vpop.permute.xlu0 %1645
  %1647 = vrot.lane.b32.xlu0 %v71, 94
  %v1648 = vpop.permute.xlu0 %1647
  %1649 = vrot.lane.b32.xlu0 %v13, 94
  %v1650 = vpop.permute.xlu0 %1649
  %vm1651 = vcmask 769024
  %v1652 = vsel %vm1651, %v1642, %v1644
  %v1653 = vsel %vm1651, %v1644, %v1646
  %v1654 = vsel %vm1651, %v1646, %v1648
  %v1655 = vsel %vm1651, %v1648, %v1650
  %v1660 = vsel %vm1637, %v1652, 0.0
  %v1661 = vsel %vm1638, %v1653, 0.0
  %v1662 = vsel %vm1639, %v1654, 0.0
  %v1663 = vsel %vm1640, %v1655, 0.0
  %1664 = vrot.lane.b32.xlu0 %v14, 96
  %v1665 = vpop.permute.xlu0 %1664
  %v1666 = vsel %vm121, %v1665, 0
  %v1669 = vsel %vm124, %v1660, 0
  %v1672 = vsel %vm124, %v1661, 0
  %v1675 = vsel %vm124, %v1662, 0
  %v1678 = vsel %vm124, %v1663, 0
  %1680 = vmatprep.subr.mxu0 %v1672
  %1681 = vmatpush1.msra.mxu0 %v1669
  %1682 = vmatprep.subr.mxu0 0.0
  %1683 = vmatpush1.msra.mxu0 0.0
  %1684 = vmatprep.subr.mxu0 0.0
  %1685 = vmatpush1.msra.mxu0 0.0
  %1686 = vmatprep.subr.mxu0 0.0
  %1687 = vmatpush1.msra.mxu0 0.0
  %1688 = vmatprep.subr.mxu0 0.0
  %1689 = vmatpush1.msra.mxu0 0.0
  %1690 = vmatprep.subr.mxu0 0.0
  %1691 = vmatpush1.msra.mxu0 0.0
  %1692 = vmatprep.subr.mxu0 0.0
  %1693 = vmatpush1.msra.mxu0 0.0
  %1694 = vmatprep.subr.mxu0 0.0
  %1695 = vmatpush1.msra.mxu0 0.0
  %1696 = vmatprep.subr.mxu0 0.0
  %1697 = vmatpush1.msra.mxu0 0.0
  %1698 = vmatprep.subr.mxu0 0.0
  %1699 = vmatpush1.msra.mxu0 0.0
  %1700 = vmatprep.subr.mxu0 0.0
  %1701 = vmatpush1.msra.mxu0 0.0
  %1702 = vmatprep.subr.mxu0 0.0
  %1703 = vmatpush1.msra.mxu0 0.0
  %1704 = vmatprep.subr.mxu0 0.0
  %1705 = vmatpush1.msra.mxu0 0.0
  %1706 = vmatprep.subr.mxu0 0.0
  %1707 = vmatpush1.msra.mxu0 0.0
  %1708 = vmatprep.subr.mxu0 0.0
  %1709 = vmatpush1.msra.mxu0 0.0
  %1710 = vmatprep.subr.mxu0 0.0
  %1711 = vmatpush1.msra.mxu0 0.0
  %1712 = vmatprep.subr.mxu0 0.0
  %1713 = vmatpush1.msra.mxu0 0.0
  %1714 = vmatprep.subr.mxu0 0.0
  %1715 = vmatpush1.msra.mxu0 0.0
  %1716 = vmatprep.subr.mxu0 0.0
  %1717 = vmatpush1.msra.mxu0 0.0
  %1718 = vmatprep.subr.mxu0 0.0
  %1719 = vmatpush1.msra.mxu0 0.0
  %1720 = vmatprep.subr.mxu0 0.0
  %1721 = vmatpush1.msra.mxu0 0.0
  %1722 = vmatprep.subr.mxu0 0.0
  %1723 = vmatpush1.msra.mxu0 0.0
  %1724 = vmatprep.subr.mxu0 0.0
  %1725 = vmatpush1.msra.mxu0 0.0
  %1726 = vmatprep.subr.mxu0 0.0
  %1727 = vmatpush1.msra.mxu0 0.0
  %1728 = vmatprep.subr.mxu0 0.0
  %1729 = vmatpush1.msra.mxu0 0.0
  %1730 = vmatprep.subr.mxu0 0.0
  %1731 = vmatpush1.msra.mxu0 0.0
  %1732 = vmatprep.subr.mxu0 0.0
  %1733 = vmatpush1.msra.mxu0 0.0
  %1734 = vmatprep.subr.mxu0 0.0
  %1735 = vmatpush1.msra.mxu0 0.0
  %1736 = vmatprep.subr.mxu0 0.0
  %1737 = vmatpush1.msra.mxu0 0.0
  %1738 = vmatprep.subr.mxu0 0.0
  %1739 = vmatpush1.msra.mxu0 0.0
  %1740 = vmatprep.subr.mxu0 0.0
  %1741 = vmatpush1.msra.mxu0 0.0
  %1742 = vmatprep.subr.mxu0 0.0
  %1743 = vmatpush1.msra.mxu0 0.0
  %1744 = vmatprep.mubr.f32.mxu0 0.0
  %1745 = vmatmul.mubr.f32.gmra.mrb[0].mxu0 %v1666
  %v1746 = vpop.f32.mrb[0].mxu0
  %v1747 = vadd.f32 0.0, %v1746
  %v1748 = vpop.f32.mrb[0].mxu0
  %v1749 = vadd.f32 0.0, %v1748
  %1750 = vdwg.mxu0
  %1751 = vmatprep.subr.mxu0 %v1678
  %1752 = vmatpush1.msra.mxu0 %v1675
  %1753 = vmatprep.subr.mxu0 0.0
  %1754 = vmatpush1.msra.mxu0 0.0
  %1755 = vmatprep.subr.mxu0 0.0
  %1756 = vmatpush1.msra.mxu0 0.0
  %1757 = vmatprep.subr.mxu0 0.0
  %1758 = vmatpush1.msra.mxu0 0.0
  %1759 = vmatprep.subr.mxu0 0.0
  %1760 = vmatpush1.msra.mxu0 0.0
  %1761 = vmatprep.subr.mxu0 0.0
  %1762 = vmatpush1.msra.mxu0 0.0
  %1763 = vmatprep.subr.mxu0 0.0
  %1764 = vmatpush1.msra.mxu0 0.0
  %1765 = vmatprep.subr.mxu0 0.0
  %1766 = vmatpush1.msra.mxu0 0.0
  %1767 = vmatprep.subr.mxu0 0.0
  %1768 = vmatpush1.msra.mxu0 0.0
  %1769 = vmatprep.subr.mxu0 0.0
  %1770 = vmatpush1.msra.mxu0 0.0
  %1771 = vmatprep.subr.mxu0 0.0
  %1772 = vmatpush1.msra.mxu0 0.0
  %1773 = vmatprep.subr.mxu0 0.0
  %1774 = vmatpush1.msra.mxu0 0.0
  %1775 = vmatprep.subr.mxu0 0.0
  %1776 = vmatpush1.msra.mxu0 0.0
  %1777 = vmatprep.subr.mxu0 0.0
  %1778 = vmatpush1.msra.mxu0 0.0
  %1779 = vmatprep.subr.mxu0 0.0
  %1780 = vmatpush1.msra.mxu0 0.0
  %1781 = vmatprep.subr.mxu0 0.0
  %1782 = vmatpush1.msra.mxu0 0.0
  %1783 = vmatprep.subr.mxu0 0.0
  %1784 = vmatpush1.msra.mxu0 0.0
  %1785 = vmatprep.subr.mxu0 0.0
  %1786 = vmatpush1.msra.mxu0 0.0
  %1787 = vmatprep.subr.mxu0 0.0
  %1788 = vmatpush1.msra.mxu0 0.0
  %1789 = vmatprep.subr.mxu0 0.0
  %1790 = vmatpush1.msra.mxu0 0.0
  %1791 = vmatprep.subr.mxu0 0.0
  %1792 = vmatpush1.msra.mxu0 0.0
  %1793 = vmatprep.subr.mxu0 0.0
  %1794 = vmatpush1.msra.mxu0 0.0
  %1795 = vmatprep.subr.mxu0 0.0
  %1796 = vmatpush1.msra.mxu0 0.0
  %1797 = vmatprep.subr.mxu0 0.0
  %1798 = vmatpush1.msra.mxu0 0.0
  %1799 = vmatprep.subr.mxu0 0.0
  %1800 = vmatpush1.msra.mxu0 0.0
  %1801 = vmatprep.subr.mxu0 0.0
  %1802 = vmatpush1.msra.mxu0 0.0
  %1803 = vmatprep.subr.mxu0 0.0
  %1804 = vmatpush1.msra.mxu0 0.0
  %1805 = vmatprep.subr.mxu0 0.0
  %1806 = vmatpush1.msra.mxu0 0.0
  %1807 = vmatprep.subr.mxu0 0.0
  %1808 = vmatpush1.msra.mxu0 0.0
  %1809 = vmatprep.subr.mxu0 0.0
  %1810 = vmatpush1.msra.mxu0 0.0
  %1811 = vmatprep.subr.mxu0 0.0
  %1812 = vmatpush1.msra.mxu0 0.0
  %1813 = vmatprep.subr.mxu0 0.0
  %1814 = vmatpush1.msra.mxu0 0.0
  %1815 = vmatprep.mubr.f32.mxu0 0.0
  %1816 = vmatmul.mubr.f32.gmra.mrb[0].mxu0 %v1666
  %v1817 = vpop.f32.mrb[0].mxu0
  %v1818 = vadd.f32 0.0, %v1817
  %v1819 = vpop.f32.mrb[0].mxu0
  %v1820 = vadd.f32 0.0, %v1819
  %1821 = vdwg.mxu0
  %v1822 = vadd.f32 %v1629, %v1747
  %v1823 = vadd.f32 %v1630, %v1749
  %v1824 = vadd.f32 %v1631, %v1818
  %v1825 = vadd.f32 %v1632, %v1820
  %1826 = vset.pattern.permute.xlu0 36
  %1827 = vperm.xlu0 %1826, %v14
  %v1828 = vpop.permute.xlu0 %1827
  %v1830 = vadd.f32 %v1822, %v1828
  %v1831 = vadd.f32 %v1823, %v1828
  %v1832 = vadd.f32 %v1824, %v1828
  %v1833 = vadd.f32 %v1825, %v1828
  %v1834 = vmax.f32 %v1830, 0.0
  %v1835 = vmax.f32 %v1831, 0.0
  %v1836 = vmax.f32 %v1832, 0.0
  %v1837 = vmax.f32 %v1833, 0.0
  %v1838 = vlaneseq
  %v1839 = vshrl.u32 %v1838, 7
  %v1840 = vadd.s32 %v1839, 8
  %v1841 = vadd.s32 %v1839, 16
  %v1842 = vadd.s32 %v1839, 24
  %v1843 = vadd.s32 %v1839, 32
  %v1844 = vadd.s32 %v1839, 40
  %v1845 = vadd.s32 %v1839, 48
  %v1846 = vadd.s32 %v1839, 56
  %v1847 = vadd.s32 %v1839, 64
  %v1848 = vadd.s32 %v1839, 72
  %v1849 = vadd.s32 %v1839, 80
  %v1850 = vadd.s32 %v1839, 88
  %v1851 = vadd.s32 %v1839, 96
  %v1852 = vadd.s32 %v1839, 104
  %v1853 = vadd.s32 %v1839, 112
  %v1854 = vadd.s32 %v1839, 120
  %v1855 = vadd.s32 %v1839, 128
  %v1856 = vadd.s32 %v1839, 136
  %v1857 = vadd.s32 %v1839, 144
  %v1858 = vadd.s32 %v1839, 152
  %v1859 = vadd.s32 %v1839, 160
  %v1860 = vadd.s32 %v1839, 168
  %v1861 = vadd.s32 %v1839, 176
  %v1862 = vadd.s32 %v1839, 184
  %v1863 = vadd.s32 %v1839, 192
  %v1864 = vadd.s32 %v1839, 200
  %v1865 = vadd.s32 %v1839, 208
  %v1866 = vadd.s32 %v1839, 216
  %v1867 = vadd.s32 %v1839, 224
  %v1868 = vadd.s32 %v1839, 232
  %v1869 = vadd.s32 %v1839, 240
  %v1870 = vadd.s32 %v1839, 248
  %v1871 = vadd.s32 %v1839, 256
  %v1872 = vadd.s32 %v1839, 264
  %v1873 = vadd.s32 %v1839, 272
  %v1874 = vadd.s32 %v1839, 280
  %v1875 = vadd.s32 %v1839, 288
  %v1876 = vadd.s32 %v1839, 296
  %v1877 = vadd.s32 %v1839, 304
  %v1878 = vadd.s32 %v1839, 312
  %v1879 = vadd.s32 %v1839, 320
  %v1880 = vadd.s32 %v1839, 328
  %v1881 = vadd.s32 %v1839, 336
  %v1882 = vadd.s32 %v1839, 344
  %v1883 = vadd.s32 %v1839, 352
  %v1884 = vadd.s32 %v1839, 360
  %v1885 = vadd.s32 %v1839, 368
  %v1886 = vadd.s32 %v1839, 376
  %v1887 = vadd.s32 %v1839, 384
  %v1888 = vadd.s32 %v1839, 392
  %v1889 = vadd.s32 %v1839, 400
  %v1890 = vadd.s32 %v1839, 408
  %v1891 = vadd.s32 %v1839, 416
  %v1892 = vadd.s32 %v1839, 424
  %v1893 = vadd.s32 %v1839, 432
  %v1894 = vadd.s32 %v1839, 440
  %v1895 = vadd.s32 %v1839, 448
  %v1896 = vadd.s32 %v1839, 456
  %v1897 = vadd.s32 %v1839, 464
  %v1898 = vadd.s32 %v1839, 472
  %v1899 = vadd.s32 %v1839, 480
  %v1900 = vadd.s32 %v1839, 488
  %v1901 = vadd.s32 %v1839, 496
  %v1902 = vadd.s32 %v1839, 504
  %v1903 = vshra.s32 %v1839, 8
  %v1904 = vshra.s32 %v1840, 8
  %v1905 = vshra.s32 %v1841, 8
  %v1906 = vshra.s32 %v1842, 8
  %v1907 = vshra.s32 %v1843, 8
  %v1908 = vshra.s32 %v1844, 8
  %v1909 = vshra.s32 %v1845, 8
  %v1910 = vshra.s32 %v1846, 8
  %v1911 = vshra.s32 %v1847, 8
  %v1912 = vshra.s32 %v1848, 8
  %v1913 = vshra.s32 %v1849, 8
  %v1914 = vshra.s32 %v1850, 8
  %v1915 = vshra.s32 %v1851, 8
  %v1916 = vshra.s32 %v1852, 8
  %v1917 = vshra.s32 %v1853, 8
  %v1918 = vshra.s32 %v1854, 8
  %v1919 = vshra.s32 %v1855, 8
  %v1920 = vshra.s32 %v1856, 8
  %v1921 = vshra.s32 %v1857, 8
  %v1922 = vshra.s32 %v1858, 8
  %v1923 = vshra.s32 %v1859, 8
  %v1924 = vshra.s32 %v1860, 8
  %v1925 = vshra.s32 %v1861, 8
  %v1926 = vshra.s32 %v1862, 8
  %v1927 = vshra.s32 %v1863, 8
  %v1928 = vshra.s32 %v1864, 8
  %v1929 = vshra.s32 %v1865, 8
  %v1930 = vshra.s32 %v1866, 8
  %v1931 = vshra.s32 %v1867, 8
  %v1932 = vshra.s32 %v1868, 8
  %v1933 = vshra.s32 %v1869, 8
  %v1934 = vshra.s32 %v1870, 8
  %v1935 = vshra.s32 %v1871, 8
  %v1936 = vshra.s32 %v1872, 8
  %v1937 = vshra.s32 %v1873, 8
  %v1938 = vshra.s32 %v1874, 8
  %v1939 = vshra.s32 %v1875, 8
  %v1940 = vshra.s32 %v1876, 8
  %v1941 = vshra.s32 %v1877, 8
  %v1942 = vshra.s32 %v1878, 8
  %v1943 = vshra.s32 %v1879, 8
  %v1944 = vshra.s32 %v1880, 8
  %v1945 = vshra.s32 %v1881, 8
  %v1946 = vshra.s32 %v1882, 8
  %v1947 = vshra.s32 %v1883, 8
  %v1948 = vshra.s32 %v1884, 8
  %v1949 = vshra.s32 %v1885, 8
  %v1950 = vshra.s32 %v1886, 8
  %v1951 = vshra.s32 %v1887, 8
  %v1952 = vshra.s32 %v1888, 8
  %v1953 = vshra.s32 %v1889, 8
  %v1954 = vshra.s32 %v1890, 8
  %v1955 = vshra.s32 %v1891, 8
  %v1956 = vshra.s32 %v1892, 8
  %v1957 = vshra.s32 %v1893, 8
  %v1958 = vshra.s32 %v1894, 8
  %v1959 = vshra.s32 %v1895, 8
  %v1960 = vshra.s32 %v1896, 8
  %v1961 = vshra.s32 %v1897, 8
  %v1962 = vshra.s32 %v1898, 8
  %v1963 = vshra.s32 %v1899, 8
  %v1964 = vshra.s32 %v1900, 8
  %v1965 = vshra.s32 %v1901, 8
  %v1966 = vshra.s32 %v1902, 8
  %vm1967 = vcmp.eq.s32.totalorder %v1903, %v16
  %vm1968 = vcmp.eq.s32.totalorder %v1904, %v16
  %vm1969 = vcmp.eq.s32.totalorder %v1905, %v16
  %vm1970 = vcmp.eq.s32.totalorder %v1906, %v16
  %vm1971 = vcmp.eq.s32.totalorder %v1907, %v16
  %vm1972 = vcmp.eq.s32.totalorder %v1908, %v16
  %vm1973 = vcmp.eq.s32.totalorder %v1909, %v16
  %vm1974 = vcmp.eq.s32.totalorder %v1910, %v16
  %vm1975 = vcmp.eq.s32.totalorder %v1911, %v16
  %vm1976 = vcmp.eq.s32.totalorder %v1912, %v16
  %vm1977 = vcmp.eq.s32.totalorder %v1913, %v16
  %vm1978 = vcmp.eq.s32.totalorder %v1914, %v16
  %vm1979 = vcmp.eq.s32.totalorder %v1915, %v16
  %vm1980 = vcmp.eq.s32.totalorder %v1916, %v16
  %vm1981 = vcmp.eq.s32.totalorder %v1917, %v16
  %vm1982 = vcmp.eq.s32.totalorder %v1918, %v16
  %vm1983 = vcmp.eq.s32.totalorder %v1919, %v16
  %vm1984 = vcmp.eq.s32.totalorder %v1920, %v16
  %vm1985 = vcmp.eq.s32.totalorder %v1921, %v16
  %vm1986 = vcmp.eq.s32.totalorder %v1922, %v16
  %vm1987 = vcmp.eq.s32.totalorder %v1923, %v16
  %vm1988 = vcmp.eq.s32.totalorder %v1924, %v16
  %vm1989 = vcmp.eq.s32.totalorder %v1925, %v16
  %vm1990 = vcmp.eq.s32.totalorder %v1926, %v16
  %vm1991 = vcmp.eq.s32.totalorder %v1927, %v16
  %vm1992 = vcmp.eq.s32.totalorder %v1928, %v16
  %vm1993 = vcmp.eq.s32.totalorder %v1929, %v16
  %vm1994 = vcmp.eq.s32.totalorder %v1930, %v16
  %vm1995 = vcmp.eq.s32.totalorder %v1931, %v16
  %vm1996 = vcmp.eq.s32.totalorder %v1932, %v16
  %vm1997 = vcmp.eq.s32.totalorder %v1933, %v16
  %vm1998 = vcmp.eq.s32.totalorder %v1934, %v16
  %vm1999 = vcmp.eq.s32.totalorder %v1935, %v16
  %vm2000 = vcmp.eq.s32.totalorder %v1936, %v16
  %vm2001 = vcmp.eq.s32.totalorder %v1937, %v16
  %vm2002 = vcmp.eq.s32.totalorder %v1938, %v16
  %vm2003 = vcmp.eq.s32.totalorder %v1939, %v16
  %vm2004 = vcmp.eq.s32.totalorder %v1940, %v16
  %vm2005 = vcmp.eq.s32.totalorder %v1941, %v16
  %vm2006 = vcmp.eq.s32.totalorder %v1942, %v16
  %vm2007 = vcmp.eq.s32.totalorder %v1943, %v16
  %vm2008 = vcmp.eq.s32.totalorder %v1944, %v16
  %vm2009 = vcmp.eq.s32.totalorder %v1945, %v16
  %vm2010 = vcmp.eq.s32.totalorder %v1946, %v16
  %vm2011 = vcmp.eq.s32.totalorder %v1947, %v16
  %vm2012 = vcmp.eq.s32.totalorder %v1948, %v16
  %vm2013 = vcmp.eq.s32.totalorder %v1949, %v16
  %vm2014 = vcmp.eq.s32.totalorder %v1950, %v16
  %vm2015 = vcmp.eq.s32.totalorder %v1951, %v16
  %vm2016 = vcmp.eq.s32.totalorder %v1952, %v16
  %vm2017 = vcmp.eq.s32.totalorder %v1953, %v16
  %vm2018 = vcmp.eq.s32.totalorder %v1954, %v16
  %vm2019 = vcmp.eq.s32.totalorder %v1955, %v16
  %vm2020 = vcmp.eq.s32.totalorder %v1956, %v16
  %vm2021 = vcmp.eq.s32.totalorder %v1957, %v16
  %vm2022 = vcmp.eq.s32.totalorder %v1958, %v16
  %vm2023 = vcmp.eq.s32.totalorder %v1959, %v16
  %vm2024 = vcmp.eq.s32.totalorder %v1960, %v16
  %vm2025 = vcmp.eq.s32.totalorder %v1961, %v16
  %vm2026 = vcmp.eq.s32.totalorder %v1962, %v16
  %vm2027 = vcmp.eq.s32.totalorder %v1963, %v16
  %vm2028 = vcmp.eq.s32.totalorder %v1964, %v16
  %vm2029 = vcmp.eq.s32.totalorder %v1965, %v16
  %vm2030 = vcmp.eq.s32.totalorder %v1966, %v16
  %v2031 = vsel %vm1967, 0.00390625, 0.0
  %v2032 = vsel %vm1968, 0.00390625, 0.0
  %v2033 = vsel %vm1969, 0.00390625, 0.0
  %v2034 = vsel %vm1970, 0.00390625, 0.0
  %v2035 = vsel %vm1971, 0.00390625, 0.0
  %v2036 = vsel %vm1972, 0.00390625, 0.0
  %v2037 = vsel %vm1973, 0.00390625, 0.0
  %v2038 = vsel %vm1974, 0.00390625, 0.0
  %v2039 = vsel %vm1975, 0.00390625, 0.0
  %v2040 = vsel %vm1976, 0.00390625, 0.0
  %v2041 = vsel %vm1977, 0.00390625, 0.0
  %v2042 = vsel %vm1978, 0.00390625, 0.0
  %v2043 = vsel %vm1979, 0.00390625, 0.0
  %v2044 = vsel %vm1980, 0.00390625, 0.0
  %v2045 = vsel %vm1981, 0.00390625, 0.0
  %v2046 = vsel %vm1982, 0.00390625, 0.0
  %v2047 = vsel %vm1983, 0.00390625, 0.0
  %v2048 = vsel %vm1984, 0.00390625, 0.0
  %v2049 = vsel %vm1985, 0.00390625, 0.0
  %v2050 = vsel %vm1986, 0.00390625, 0.0
  %v2051 = vsel %vm1987, 0.00390625, 0.0
  %v2052 = vsel %vm1988, 0.00390625, 0.0
  %v2053 = vsel %vm1989, 0.00390625, 0.0
  %v2054 = vsel %vm1990, 0.00390625, 0.0
  %v2055 = vsel %vm1991, 0.00390625, 0.0
  %v2056 = vsel %vm1992, 0.00390625, 0.0
  %v2057 = vsel %vm1993, 0.00390625, 0.0
  %v2058 = vsel %vm1994, 0.00390625, 0.0
  %v2059 = vsel %vm1995, 0.00390625, 0.0
  %v2060 = vsel %vm1996, 0.00390625, 0.0
  %v2061 = vsel %vm1997, 0.00390625, 0.0
  %v2062 = vsel %vm1998, 0.00390625, 0.0
  %v2063 = vsel %vm1999, 0.00390625, 0.0
  %v2064 = vsel %vm2000, 0.00390625, 0.0
  %v2065 = vsel %vm2001, 0.00390625, 0.0
  %v2066 = vsel %vm2002, 0.00390625, 0.0
  %v2067 = vsel %vm2003, 0.00390625, 0.0
  %v2068 = vsel %vm2004, 0.00390625, 0.0
  %v2069 = vsel %vm2005, 0.00390625, 0.0
  %v2070 = vsel %vm2006, 0.00390625, 0.0
  %v2071 = vsel %vm2007, 0.00390625, 0.0
  %v2072 = vsel %vm2008, 0.00390625, 0.0
  %v2073 = vsel %vm2009, 0.00390625, 0.0
  %v2074 = vsel %vm2010, 0.00390625, 0.0
  %v2075 = vsel %vm2011, 0.00390625, 0.0
  %v2076 = vsel %vm2012, 0.00390625, 0.0
  %v2077 = vsel %vm2013, 0.00390625, 0.0
  %v2078 = vsel %vm2014, 0.00390625, 0.0
  %v2079 = vsel %vm2015, 0.00390625, 0.0
  %v2080 = vsel %vm2016, 0.00390625, 0.0
  %v2081 = vsel %vm2017, 0.00390625, 0.0
  %v2082 = vsel %vm2018, 0.00390625, 0.0
  %v2083 = vsel %vm2019, 0.00390625, 0.0
  %v2084 = vsel %vm2020, 0.00390625, 0.0
  %v2085 = vsel %vm2021, 0.00390625, 0.0
  %v2086 = vsel %vm2022, 0.00390625, 0.0
  %v2087 = vsel %vm2023, 0.00390625, 0.0
  %v2088 = vsel %vm2024, 0.00390625, 0.0
  %v2089 = vsel %vm2025, 0.00390625, 0.0
  %v2090 = vsel %vm2026, 0.00390625, 0.0
  %v2091 = vsel %vm2027, 0.00390625, 0.0
  %v2092 = vsel %vm2028, 0.00390625, 0.0
  %v2093 = vsel %vm2029, 0.00390625, 0.0
  %v2094 = vsel %vm2030, 0.00390625, 0.0
  %2095 = vmatprep.subr.mxu0 0.0
  %2096 = vmatpush1.msra.mxu0 %v2031
  %2097 = vmatprep.subr.mxu0 0.0
  %2098 = vmatpush1.msra.mxu0 %v2032
  %2099 = vmatprep.subr.mxu0 0.0
  %2100 = vmatpush1.msra.mxu0 %v2033
  %2101 = vmatprep.subr.mxu0 0.0
  %2102 = vmatpush1.msra.mxu0 %v2034
  %2103 = vmatprep.subr.mxu0 0.0
  %2104 = vmatpush1.msra.mxu0 %v2035
  %2105 = vmatprep.subr.mxu0 0.0
  %2106 = vmatpush1.msra.mxu0 %v2036
  %2107 = vmatprep.subr.mxu0 0.0
  %2108 = vmatpush1.msra.mxu0 %v2037
  %2109 = vmatprep.subr.mxu0 0.0
  %2110 = vmatpush1.msra.mxu0 %v2038
  %2111 = vmatprep.subr.mxu0 0.0
  %2112 = vmatpush1.msra.mxu0 %v2039
  %2113 = vmatprep.subr.mxu0 0.0
  %2114 = vmatpush1.msra.mxu0 %v2040
  %2115 = vmatprep.subr.mxu0 0.0
  %2116 = vmatpush1.msra.mxu0 %v2041
  %2117 = vmatprep.subr.mxu0 0.0
  %2118 = vmatpush1.msra.mxu0 %v2042
  %2119 = vmatprep.subr.mxu0 0.0
  %2120 = vmatpush1.msra.mxu0 %v2043
  %2121 = vmatprep.subr.mxu0 0.0
  %2122 = vmatpush1.msra.mxu0 %v2044
  %2123 = vmatprep.subr.mxu0 0.0
  %2124 = vmatpush1.msra.mxu0 %v2045
  %2125 = vmatprep.subr.mxu0 0.0
  %2126 = vmatpush1.msra.mxu0 %v2046
  %2127 = vmatprep.subr.mxu0 0.0
  %2128 = vmatpush1.msra.mxu0 %v2047
  %2129 = vmatprep.subr.mxu0 0.0
  %2130 = vmatpush1.msra.mxu0 %v2048
  %2131 = vmatprep.subr.mxu0 0.0
  %2132 = vmatpush1.msra.mxu0 %v2049
  %2133 = vmatprep.subr.mxu0 0.0
  %2134 = vmatpush1.msra.mxu0 %v2050
  %2135 = vmatprep.subr.mxu0 0.0
  %2136 = vmatpush1.msra.mxu0 %v2051
  %2137 = vmatprep.subr.mxu0 0.0
  %2138 = vmatpush1.msra.mxu0 %v2052
  %2139 = vmatprep.subr.mxu0 0.0
  %2140 = vmatpush1.msra.mxu0 %v2053
  %2141 = vmatprep.subr.mxu0 0.0
  %2142 = vmatpush1.msra.mxu0 %v2054
  %2143 = vmatprep.subr.mxu0 0.0
  %2144 = vmatpush1.msra.mxu0 %v2055
  %2145 = vmatprep.subr.mxu0 0.0
  %2146 = vmatpush1.msra.mxu0 %v2056
  %2147 = vmatprep.subr.mxu0 0.0
  %2148 = vmatpush1.msra.mxu0 %v2057
  %2149 = vmatprep.subr.mxu0 0.0
  %2150 = vmatpush1.msra.mxu0 %v2058
  %2151 = vmatprep.subr.mxu0 0.0
  %2152 = vmatpush1.msra.mxu0 %v2059
  %2153 = vmatprep.subr.mxu0 0.0
  %2154 = vmatpush1.msra.mxu0 %v2060
  %2155 = vmatprep.subr.mxu0 0.0
  %2156 = vmatpush1.msra.mxu0 %v2061
  %2157 = vmatprep.subr.mxu0 0.0
  %2158 = vmatpush1.msra.mxu0 %v2062
  %2159 = vmatprep.mubr.f32.mxu0 %v1835
  %2160 = vmatmul.mubr.f32.gmra.mrb[0].mxu0 %v1834
  %v2161 = vpop.f32.mrb[0].mxu0
  %v2162 = vadd.f32 0.0, %v2161
  %v2163 = vpop.f32.mrb[0].mxu0
  %2164 = vdwg.mxu0
  %2165 = vmatprep.subr.mxu0 0.0
  %2166 = vmatpush1.msra.mxu0 %v2063
  %2167 = vmatprep.subr.mxu0 0.0
  %2168 = vmatpush1.msra.mxu0 %v2064
  %2169 = vmatprep.subr.mxu0 0.0
  %2170 = vmatpush1.msra.mxu0 %v2065
  %2171 = vmatprep.subr.mxu0 0.0
  %2172 = vmatpush1.msra.mxu0 %v2066
  %2173 = vmatprep.subr.mxu0 0.0
  %2174 = vmatpush1.msra.mxu0 %v2067
  %2175 = vmatprep.subr.mxu0 0.0
  %2176 = vmatpush1.msra.mxu0 %v2068
  %2177 = vmatprep.subr.mxu0 0.0
  %2178 = vmatpush1.msra.mxu0 %v2069
  %2179 = vmatprep.subr.mxu0 0.0
  %2180 = vmatpush1.msra.mxu0 %v2070
  %2181 = vmatprep.subr.mxu0 0.0
  %2182 = vmatpush1.msra.mxu0 %v2071
  %2183 = vmatprep.subr.mxu0 0.0
  %2184 = vmatpush1.msra.mxu0 %v2072
  %2185 = vmatprep.subr.mxu0 0.0
  %2186 = vmatpush1.msra.mxu0 %v2073
  %2187 = vmatprep.subr.mxu0 0.0
  %2188 = vmatpush1.msra.mxu0 %v2074
  %2189 = vmatprep.subr.mxu0 0.0
  %2190 = vmatpush1.msra.mxu0 %v2075
  %2191 = vmatprep.subr.mxu0 0.0
  %2192 = vmatpush1.msra.mxu0 %v2076
  %2193 = vmatprep.subr.mxu0 0.0
  %2194 = vmatpush1.msra.mxu0 %v2077
  %2195 = vmatprep.subr.mxu0 0.0
  %2196 = vmatpush1.msra.mxu0 %v2078
  %2197 = vmatprep.subr.mxu0 0.0
  %2198 = vmatpush1.msra.mxu0 %v2079
  %2199 = vmatprep.subr.mxu0 0.0
  %2200 = vmatpush1.msra.mxu0 %v2080
  %2201 = vmatprep.subr.mxu0 0.0
  %2202 = vmatpush1.msra.mxu0 %v2081
  %2203 = vmatprep.subr.mxu0 0.0
  %2204 = vmatpush1.msra.mxu0 %v2082
  %2205 = vmatprep.subr.mxu0 0.0
  %2206 = vmatpush1.msra.mxu0 %v2083
  %2207 = vmatprep.subr.mxu0 0.0
  %2208 = vmatpush1.msra.mxu0 %v2084
  %2209 = vmatprep.subr.mxu0 0.0
  %2210 = vmatpush1.msra.mxu0 %v2085
  %2211 = vmatprep.subr.mxu0 0.0
  %2212 = vmatpush1.msra.mxu0 %v2086
  %2213 = vmatprep.subr.mxu0 0.0
  %2214 = vmatpush1.msra.mxu0 %v2087
  %2215 = vmatprep.subr.mxu0 0.0
  %2216 = vmatpush1.msra.mxu0 %v2088
  %2217 = vmatprep.subr.mxu0 0.0
  %2218 = vmatpush1.msra.mxu0 %v2089
  %2219 = vmatprep.subr.mxu0 0.0
  %2220 = vmatpush1.msra.mxu0 %v2090
  %2221 = vmatprep.subr.mxu0 0.0
  %2222 = vmatpush1.msra.mxu0 %v2091
  %2223 = vmatprep.subr.mxu0 0.0
  %2224 = vmatpush1.msra.mxu0 %v2092
  %2225 = vmatprep.subr.mxu0 0.0
  %2226 = vmatpush1.msra.mxu0 %v2093
  %2227 = vmatprep.subr.mxu0 0.0
  %2228 = vmatpush1.msra.mxu0 %v2094
  %2229 = vmatprep.mubr.f32.mxu0 %v1837
  %2230 = vmatmul.mubr.f32.gmra.mrb[0].mxu0 %v1836
  %v2231 = vpop.f32.mrb[0].mxu0
  %v2232 = vadd.f32 %v2162, %v2231
  %v2233 = vpop.f32.mrb[0].mxu0
  %2234 = vdwg.mxu0
  %2235 = vset.pattern.permute.xlu0 48
  %2236 = vperm.xlu0 %2235, %v14
  %v2237 = vpop.permute.xlu0 %2236
  %2239 = vrot.lane.b32.xlu0 %v14, 88
  %v2240 = vpop.permute.xlu0 %2239
  %vm2241 = vcmask 64512
  %v2242 = vsel %vm2241, %v2240, 0
  %2244 = vmatprep.subr.mxu0 0.0
  %2245 = vmatpush1.msra.mxu0 %v2232
  %2246 = vmatprep.subr.mxu0 0.0
  %2247 = vmatpush1.msra.mxu0 0.0
  %2248 = vmatprep.subr.mxu0 0.0
  %2249 = vmatpush1.msra.mxu0 0.0
  %2250 = vmatprep.subr.mxu0 0.0
  %2251 = vmatpush1.msra.mxu0 0.0
  %2252 = vmatprep.subr.mxu0 0.0
  %2253 = vmatpush1.msra.mxu0 0.0
  %2254 = vmatprep.subr.mxu0 0.0
  %2255 = vmatpush1.msra.mxu0 0.0
  %2256 = vmatprep.subr.mxu0 0.0
  %2257 = vmatpush1.msra.mxu0 0.0
  %2258 = vmatprep.subr.mxu0 0.0
  %2259 = vmatpush1.msra.mxu0 0.0
  %2260 = vmatprep.subr.mxu0 0.0
  %2261 = vmatpush1.msra.mxu0 0.0
  %2262 = vmatprep.subr.mxu0 0.0
  %2263 = vmatpush1.msra.mxu0 0.0
  %2264 = vmatprep.subr.mxu0 0.0
  %2265 = vmatpush1.msra.mxu0 0.0
  %2266 = vmatprep.subr.mxu0 0.0
  %2267 = vmatpush1.msra.mxu0 0.0
  %2268 = vmatprep.subr.mxu0 0.0
  %2269 = vmatpush1.msra.mxu0 0.0
  %2270 = vmatprep.subr.mxu0 0.0
  %2271 = vmatpush1.msra.mxu0 0.0
  %2272 = vmatprep.subr.mxu0 0.0
  %2273 = vmatpush1.msra.mxu0 0.0
  %2274 = vmatprep.subr.mxu0 0.0
  %2275 = vmatpush1.msra.mxu0 0.0
  %2276 = vmatprep.subr.mxu0 0.0
  %2277 = vmatpush1.msra.mxu0 0.0
  %2278 = vmatprep.subr.mxu0 0.0
  %2279 = vmatpush1.msra.mxu0 0.0
  %2280 = vmatprep.subr.mxu0 0.0
  %2281 = vmatpush1.msra.mxu0 0.0
  %2282 = vmatprep.subr.mxu0 0.0
  %2283 = vmatpush1.msra.mxu0 0.0
  %2284 = vmatprep.subr.mxu0 0.0
  %2285 = vmatpush1.msra.mxu0 0.0
  %2286 = vmatprep.subr.mxu0 0.0
  %2287 = vmatpush1.msra.mxu0 0.0
  %2288 = vmatprep.subr.mxu0 0.0
  %2289 = vmatpush1.msra.mxu0 0.0
  %2290 = vmatprep.subr.mxu0 0.0
  %2291 = vmatpush1.msra.mxu0 0.0
  %2292 = vmatprep.subr.mxu0 0.0
  %2293 = vmatpush1.msra.mxu0 0.0
  %2294 = vmatprep.subr.mxu0 0.0
  %2295 = vmatpush1.msra.mxu0 0.0
  %2296 = vmatprep.subr.mxu0 0.0
  %2297 = vmatpush1.msra.mxu0 0.0
  %2298 = vmatprep.subr.mxu0 0.0
  %2299 = vmatpush1.msra.mxu0 0.0
  %2300 = vmatprep.subr.mxu0 0.0
  %2301 = vmatpush1.msra.mxu0 0.0
  %2302 = vmatprep.subr.mxu0 0.0
  %2303 = vmatpush1.msra.mxu0 0.0
  %2304 = vmatprep.subr.mxu0 0.0
  %2305 = vmatpush1.msra.mxu0 0.0
  %2306 = vmatprep.subr.mxu0 0.0
  %2307 = vmatpush1.msra.mxu0 0.0
  %2308 = vmatprep.mubr.f32.mxu0 0.0
  %2309 = vmatmul.mubr.f32.gmra.mrb[0].mxu0 %v2242
  %v2310 = vpop.f32.mrb[0].mxu0
  %v2311 = vadd.f32 %v2237, %v2310
  %v2312 = vpop.f32.mrb[0].mxu0
  %2313 = vdwg.mxu0
  %2314 = vst [vmem:[%s2] sm:$0xff] %v2311
  // Predicated region
  $region10: #{extractor_head.1} parent=0 // pred_check
    _
  $region11: #{extractor_head.1} parent=0 // pred_check_branch
    %2316 = sbr.rel (0) target = $region13
  $region12: #{extractor_head.1} parent=0 // pred_region
    _
  $region13: #{extractor_head.1} parent=0 // pred_fallthru
    _
  // Predicated region
  $region14: #{extractor_head.1} parent=0 // pred_check
    _
  $region15: #{extractor_head.1} parent=0 // pred_check_branch
    %2318 = sbr.rel (0) target = $region17
  $region16: #{extractor_head.1} parent=0 // pred_region
    _
  $region17: #{extractor_head.1} parent=0 // pred_fallthru
    _

</llo_original>
